<compile_context>
chip_gen: v7x
topology: tpu7x:2x2x1
jax: 0.10.0
libtpu: 0.0.40
codegen_flags: <defaults>
</compile_context>

<pallas_src>
import numpy as np
import jax
import jax.numpy as jnp
from jax import lax
from jax.experimental import pallas as pl
from jax.experimental.pallas import tpu as pltpu


# ------------------------------------------------------------------ constants
K_MAX = 512      # common (padded) frame length = max n_fft over configs
F_HALF = 512     # fused output half-width: cols [0:F_HALF)=real, [F_HALF:)=imag
TM = 32          # frame rows per grid step (multiple of 8 -> f32 sublane aligned)

# torchaudio.functional.spectrogram configs from Model.forward (torchaudio >= 0.11).
_CONFIGS = (
    dict(n_fft=64,  win_kind="hann",    win_length=44,  hop=16,  pad=0,
         center=True,  pad_mode="reflect",  onesided=True,  normalized="window",
         power=1.0),
    dict(n_fft=128, win_kind="hann",    win_length=128, hop=3,   pad=0,
         center=False, pad_mode="reflect",  onesided=True,  normalized=False,
         power=None),
    dict(n_fft=512, win_kind="hamming", win_length=256, hop=128, pad=0,
         center=True,  pad_mode="constant", onesided=True,  normalized="frame_length",
         power=2.0),
    dict(n_fft=512, win_kind="hamming", win_length=512, hop=128, pad=32,
         center=True,  pad_mode="reflect",  onesided=False, normalized=False,
         power=2.0),
)


def _window(kind, n):
    # torch.hann_window / torch.hamming_window with periodic=True
    k = np.arange(n, dtype=np.float64)
    if kind == "hann":
        return 0.5 * (1.0 - np.cos(2.0 * np.pi * k / n))
    return 0.54 - 0.46 * np.cos(2.0 * np.pi * k / n)


def _round_up(v, m):
    return ((v + m - 1) // m) * m


def _power_code(p):
    # 0: complex (power=None), 1: magnitude (power=1), 2: power spectrum (power=2)
    if p is None:
        return 0
    return 1 if float(p) == 1.0 else 2


def _build_weights():
    """(4, 512, 1024) f32: per-config window-baked DFT matrix [cos | -sin]."""
    W = np.zeros((len(_CONFIGS), K_MAX, 2 * F_HALF), np.float32)
    f_out = []
    for ci, c in enumerate(_CONFIGS):
        n_fft, wl = c["n_fft"], c["win_length"]
        win = _window(c["win_kind"], wl)
        wfull = np.zeros(n_fft, np.float64)
        left = (n_fft - wl) // 2                   # torch.stft centers short windows
        wfull[left:left + wl] = win

        if c["normalized"] == "window" or c["normalized"] is True:
            scale = 1.0 / np.sqrt(np.sum(win ** 2))      # spec /= sqrt(sum(window^2))
        elif c["normalized"] == "frame_length":
            # torchaudio 'frame_length' -> torch.stft(normalized=True), which is an
            # ortho-normalized length-n_fft FFT: divide by sqrt(n_fft).
            scale = 1.0 / np.sqrt(n_fft)
        else:
            scale = 1.0

        F = n_fft // 2 + 1 if c["onesided"] else n_fft
        n = np.arange(n_fft, dtype=np.float64)[:, None]
        k = np.arange(F, dtype=np.float64)[None, :]
        ang = 2.0 * np.pi * n * k / n_fft
        W[ci, :n_fft, :F] = wfull[:, None] * np.cos(ang) * scale
        W[ci, :n_fft, F_HALF:F_HALF + F] = wfull[:, None] * (-np.sin(ang)) * scale
        f_out.append(F)
    return W, f_out


def _frames(sig, c):
    """torch.stft framing -> (B*n_frames, K_MAX) f32 frame matrix."""
    # TODO(synk): for the hop=3 config this XLA gather expands the waveform ~170x;
    # in-kernel framing via pl.ds on the padded waveform would avoid that copy.
    B = sig.shape[0]
    s = sig
    if c["pad"] > 0:
        s = jnp.pad(s, ((0, 0), (c["pad"], c["pad"])))
    if c["center"]:
        mode = "reflect" if c["pad_mode"] == "reflect" else "constant"
        s = jnp.pad(s, ((0, 0), (c["n_fft"] // 2, c["n_fft"] // 2)), mode=mode)
    Tp = s.shape[1]
    n_frames = 1 + (Tp - c["n_fft"]) // c["hop"]
    # Gather K_MAX-wide frames directly; columns >= n_fft multiply zero weight rows,
    # so their contents are irrelevant (tail zero-pad only keeps indices in range).
    if K_MAX > c["n_fft"]:
        s = jnp.pad(s, ((0, 0), (0, K_MAX - c["n_fft"])))
    idx = (np.arange(n_frames) * c["hop"])[:, None] + np.arange(K_MAX)[None, :]
    fr = s[:, idx]                                        # (B, n_frames, K_MAX)
    return fr.reshape(B * n_frames, K_MAX), B, n_frames


# ------------------------------------------------------------------ kernel
def _spec_kernel(cfg_ref, pw_ref, fr_ref, w_ref, out_ref):
    i = pl.program_id(0)
    pw = pw_ref[i]                                        # 0: complex, 1: abs, 2: abs^2
    prod = jnp.dot(fr_ref[...], w_ref[0],
                   preferred_element_type=jnp.float32)    # (TM, 2*F_HALF)
    re = prod[:, :F_HALF]
    im = prod[:, F_HALF:]
    p2 = re * re + im * im
    mag = jnp.where(pw == 1, jnp.sqrt(p2), p2)
    out_ref[:, :F_HALF] = jnp.where(pw == 0, re, mag)
    out_ref[:, F_HALF:] = jnp.where(pw == 0, im, jnp.zeros_like(im))


# ------------------------------------------------------------------ forward
@jax.jit
def model_forward(x, y):
    W_np, f_out = _build_weights()

    blocks = []          # frame blocks (and zero row-padding) to concatenate
    tile_cfg, tile_pw = [], []
    seg_meta = []        # (cfg_idx, sig_idx, row_start, B, n_frames)
    row = 0
    for ci, c in enumerate(_CONFIGS):
        m_in_cfg = 0
        for si, sig in enumerate((x, y)):
            fr, B, nf = _frames(sig, c)
            seg_meta.append((ci, si, row + m_in_cfg, B, nf))
            blocks.append(fr)
            m_in_cfg += fr.shape[0]
        mp = _round_up(m_in_cfg, TM)
        if mp > m_in_cfg:
            blocks.append(jnp.zeros((mp - m_in_cfg, K_MAX), jnp.float32))
        n_tiles_c = mp // TM
        tile_cfg += [ci] * n_tiles_c
        tile_pw += [_power_code(c["power"])] * n_tiles_c
        row += mp

    frames_all = jnp.concatenate(blocks, axis=0)          # (row, K_MAX) f32
    n_tiles = len(tile_cfg)

    out = pl.pallas_call(
        _spec_kernel,
        out_shape=jax.ShapeDtypeStruct((row, 2 * F_HALF), jnp.float32),
        grid_spec=pltpu.PrefetchScalarGridSpec(
            num_scalar_prefetch=2,
            grid=(n_tiles,),
            in_specs=[
                # frame tile for this grid step
                pl.BlockSpec((TM, K_MAX), lambda i, cfg, pw: (i, 0)),
                # per-config DFT matrix, selected via scalar prefetch; the block
                # index only changes on config boundaries so it is re-DMA'd 4x total
                pl.BlockSpec((1, K_MAX, 2 * F_HALF),
                             lambda i, cfg, pw: (cfg[i], 0, 0)),
            ],
            out_specs=pl.BlockSpec((TM, 2 * F_HALF), lambda i, cfg, pw: (i, 0)),
        ),
        compiler_params=pltpu.CompilerParams(
            dimension_semantics=("parallel",)),
    )(jnp.asarray(tile_cfg, jnp.int32), jnp.asarray(tile_pw, jnp.int32),
      frames_all, jnp.asarray(W_np))

    # split back per (config, signal): slice valid freq bins, reshape, (B, F, T)
    specs = {}
    for (ci, si, r0, B, nf) in seg_meta:
        c = _CONFIGS[ci]
        F = f_out[ci]
        blk = out[r0:r0 + B * nf]
        if c["power"] is None:
            spec = lax.complex(blk[:, :F], blk[:, F_HALF:F_HALF + F])  # complex64
        else:
            spec = blk[:, :F]
        specs[(ci, si)] = jnp.transpose(spec.reshape(B, nf, F), (0, 2, 1))

    return (specs[(0, 0)], specs[(1, 0)], specs[(2, 0)], specs[(3, 0)],
            specs[(0, 1)], specs[(1, 1)], specs[(2, 1)], specs[(3, 1)])


if __name__ == "__main__":
    key = jax.random.PRNGKey(0)
    kx, ky = jax.random.split(key)
    x = jax.random.uniform(kx, (2, 256), dtype=jnp.float32)   # (batch, time)
    y = jax.random.uniform(ky, (2, 320), dtype=jnp.float32)   # (batch, time)

    outs = model_forward(x, y)
    for o in outs:
        jax.block_until_ready(o)
    print("KERNEL_OK")
</pallas_src>

<mosaic_0001>
module attributes {stable_mosaic.version = 11 : i64} {
  func.func private @main(%arg0: i32) attributes {dimension_semantics = [#tpu.dimension_semantics<core_parallel>], iteration_bounds = array<i64: 2>, tpu.core_type = #tpu.core_type<sc_scalar_subcore>, window_params = []} {
    return
  }
}

module attributes {stable_mosaic.version = 11 : i64} {
  func.func private @main(%arg0: i32) attributes {dimension_semantics = [#tpu.dimension_semantics<core_parallel>], iteration_bounds = array<i64: 2>, tpu.core_type = #tpu.core_type<sc_scalar_subcore>, window_params = []} {
    return
  }
}

module attributes {stable_mosaic.version = 11 : i64} {
  func.func @_spec_kernel(%arg0: i32, %arg1: memref<12xi32, #tpu.memory_space<smem>>, %arg2: memref<12xi32, #tpu.memory_space<smem>>, %arg3: memref<32x512xf32, #tpu.memory_space<vmem>>, %arg4: memref<1x512x1024xf32, #tpu.memory_space<vmem>>, %arg5: memref<32x1024xf32, #tpu.memory_space<vmem>>) attributes {dimension_semantics = [#tpu.dimension_semantics<parallel>], iteration_bounds = array<i64: 12>, scalar_prefetch = 2 : i64, scratch_operands = 0 : i64, tpu.core_type = #tpu.core_type<tc>, window_params = [{transform_indices = @transform_0, window_bounds = array<i64: 32, 512>}, {transform_indices = @transform_1, window_bounds = array<i64: 1, 512, 1024>}, {transform_indices = @transform_2, window_bounds = array<i64: 32, 1024>}]} {
    %0 = arith.index_cast %arg0 : i32 to index
    %1 = memref.load %arg2[%0] : memref<12xi32, #tpu.memory_space<smem>>
    %c0 = arith.constant 0 : index
    %c0_0 = arith.constant 0 : index
    %2 = vector.load %arg3[%c0, %c0_0] : memref<32x512xf32, #tpu.memory_space<vmem>>, vector<32x512xf32>
    %c0_1 = arith.constant 0 : index
    %c0_2 = arith.constant 0 : index
    %c0_3 = arith.constant 0 : index
    %3 = vector.load %arg4[%c0_1, %c0_2, %c0_3] : memref<1x512x1024xf32, #tpu.memory_space<vmem>>, vector<1x512x1024xf32>
    %4 = vector.shape_cast %3 : vector<1x512x1024xf32> to vector<512x1024xf32>
    %cst = arith.constant dense<0.000000e+00> : vector<32x1024xf32>
    %5 = tpu.matmul %2, %4, %cst {dimension_numbers = #tpu.dot_dimension_numbers<[1], [0], [0], [1], [0, 0, 1, 1], [], []>} : vector<32x512xf32>, vector<512x1024xf32>, vector<32x1024xf32> -> vector<32x1024xf32>
    %6 = vector.extract_strided_slice %5 {offsets = [0, 0], sizes = [32, 512], strides = [1, 1]} : vector<32x1024xf32> to vector<32x512xf32>
    %7 = vector.extract_strided_slice %5 {offsets = [0, 512], sizes = [32, 512], strides = [1, 1]} : vector<32x1024xf32> to vector<32x512xf32>
    %8 = arith.mulf %6, %6 : vector<32x512xf32>
    %9 = arith.mulf %7, %7 : vector<32x512xf32>
    %10 = arith.addf %8, %9 : vector<32x512xf32>
    %c1_i32 = arith.constant 1 : i32
    %11 = arith.cmpi eq, %1, %c1_i32 : i32
    %12 = math.sqrt %10 : vector<32x512xf32>
    %13 = arith.select %11, %12, %10 : vector<32x512xf32>
    %c0_i32 = arith.constant 0 : i32
    %14 = arith.cmpi eq, %1, %c0_i32 : i32
    %15 = arith.select %14, %6, %13 : vector<32x512xf32>
    %c0_4 = arith.constant 0 : index
    %c0_5 = arith.constant 0 : index
    %16 = vector.load %arg5[%c0_4, %c0_5] : memref<32x1024xf32, #tpu.memory_space<vmem>>, vector<32x512xf32>
    tpu.vector_store %arg5[%c0_4, %c0_5], %15 {strides = array<i32>} : memref<32x1024xf32, #tpu.memory_space<vmem>>, vector<32x512xf32>,
    %c0_i32_6 = arith.constant 0 : i32
    %17 = arith.cmpi eq, %1, %c0_i32_6 : i32
    %cst_7 = arith.constant 0.000000e+00 : f32
    %18 = vector.broadcast %cst_7 : f32 to vector<32x512xf32>
    %19 = arith.select %17, %7, %18 : vector<32x512xf32>
    %c0_8 = arith.constant 0 : index
    %c512 = arith.constant 512 : index
    %20 = vector.load %arg5[%c0_8, %c512] : memref<32x1024xf32, #tpu.memory_space<vmem>>, vector<32x512xf32>
    tpu.vector_store %arg5[%c0_8, %c512], %19 {strides = array<i32>} : memref<32x1024xf32, #tpu.memory_space<vmem>>, vector<32x512xf32>,
    return
  }
  func.func @transform_0(%arg0: i32, %arg1: memref<12xi32, #tpu.memory_space<smem>>, %arg2: memref<12xi32, #tpu.memory_space<smem>>) -> (i32, i32) {
    %c0_i32 = arith.constant 0 : i32
    %c0_i32_0 = arith.constant 0 : i32
    return %arg0, %c0_i32 : i32, i32
  }
  func.func @transform_1(%arg0: i32, %arg1: memref<12xi32, #tpu.memory_space<smem>>, %arg2: memref<12xi32, #tpu.memory_space<smem>>) -> (i32, i32, i32) {
    %0 = arith.index_cast %arg0 : i32 to index
    %1 = memref.load %arg1[%0] : memref<12xi32, #tpu.memory_space<smem>>
    %c0_i32 = arith.constant 0 : i32
    %c0_i32_0 = arith.constant 0 : i32
    %c0_i32_1 = arith.constant 0 : i32
    return %1, %c0_i32, %c0_i32_0 : i32, i32, i32
  }
  func.func @transform_2(%arg0: i32, %arg1: memref<12xi32, #tpu.memory_space<smem>>, %arg2: memref<12xi32, #tpu.memory_space<smem>>) -> (i32, i32) {
    %c0_i32 = arith.constant 0 : i32
    %c0_i32_0 = arith.constant 0 : i32
    return %arg0, %c0_i32 : i32, i32
  }
}

</mosaic_0001>

<llo_original>
// kernel: custom-call.1
$region0: #{custom-call.1}
  %s0 = inlined_call_operand.vmem [shape: f32[2,65,65], index: 0, kind: input, shape index: {}]
  %s1 = inlined_call_operand.vmem [shape: f32[2,65,65], index: 1, kind: input, shape index: {}]
  %s2 = inlined_call_operand.vmem [shape: c64[2,65,65], index: 2, kind: output, shape index: {}]
  %s4 = scalar_lea.vmem %s2, 144
  %v5 = vld [vmem:[%s0] sm:$0xff]
  %6 = vst [vmem:[%s2] sm:$0xff] %v5
  %s7 = scalar_lea.vmem %s2, 8
  %s8 = scalar_lea.vmem %s0, 8
  %v9 = vld [vmem:[%s8] sm:$0xff]
  %10 = vst [vmem:[%s7] sm:$0xff] %v9
  %s11 = scalar_lea.vmem %s2, 16
  %s12 = scalar_lea.vmem %s0, 16
  %v13 = vld [vmem:[%s12] sm:$0xff]
  %14 = vst [vmem:[%s11] sm:$0xff] %v13
  %s15 = scalar_lea.vmem %s2, 24
  %s16 = scalar_lea.vmem %s0, 24
  %v17 = vld [vmem:[%s16] sm:$0xff]
  %18 = vst [vmem:[%s15] sm:$0xff] %v17
  %s19 = scalar_lea.vmem %s2, 32
  %s20 = scalar_lea.vmem %s0, 32
  %v21 = vld [vmem:[%s20] sm:$0xff]
  %22 = vst [vmem:[%s19] sm:$0xff] %v21
  %s23 = scalar_lea.vmem %s2, 40
  %s24 = scalar_lea.vmem %s0, 40
  %v25 = vld [vmem:[%s24] sm:$0xff]
  %26 = vst [vmem:[%s23] sm:$0xff] %v25
  %s27 = scalar_lea.vmem %s2, 48
  %s28 = scalar_lea.vmem %s0, 48
  %v29 = vld [vmem:[%s28] sm:$0xff]
  %30 = vst [vmem:[%s27] sm:$0xff] %v29
  %s31 = scalar_lea.vmem %s2, 56
  %s32 = scalar_lea.vmem %s0, 56
  %v33 = vld [vmem:[%s32] sm:$0xff]
  %34 = vst [vmem:[%s31] sm:$0xff] %v33
  %s35 = scalar_lea.vmem %s2, 64
  %s36 = scalar_lea.vmem %s0, 64
  %v37 = vld [vmem:[%s36] sm:$0xff]
  %38 = vst [vmem:[%s35] sm:$0xff] %v37
  %s39 = scalar_lea.vmem %s2, 72
  %s40 = scalar_lea.vmem %s0, 72
  %v41 = vld [vmem:[%s40] sm:$0xff]
  %42 = vst [vmem:[%s39] sm:$0xff] %v41
  %s43 = scalar_lea.vmem %s2, 80
  %s44 = scalar_lea.vmem %s0, 80
  %v45 = vld [vmem:[%s44] sm:$0xff]
  %46 = vst [vmem:[%s43] sm:$0xff] %v45
  %s47 = scalar_lea.vmem %s2, 88
  %s48 = scalar_lea.vmem %s0, 88
  %v49 = vld [vmem:[%s48] sm:$0xff]
  %50 = vst [vmem:[%s47] sm:$0xff] %v49
  %s51 = scalar_lea.vmem %s2, 96
  %s52 = scalar_lea.vmem %s0, 96
  %v53 = vld [vmem:[%s52] sm:$0xff]
  %54 = vst [vmem:[%s51] sm:$0xff] %v53
  %s55 = scalar_lea.vmem %s2, 104
  %s56 = scalar_lea.vmem %s0, 104
  %v57 = vld [vmem:[%s56] sm:$0xff]
  %58 = vst [vmem:[%s55] sm:$0xff] %v57
  %s59 = scalar_lea.vmem %s2, 112
  %s60 = scalar_lea.vmem %s0, 112
  %v61 = vld [vmem:[%s60] sm:$0xff]
  %62 = vst [vmem:[%s59] sm:$0xff] %v61
  %s63 = scalar_lea.vmem %s2, 120
  %s64 = scalar_lea.vmem %s0, 120
  %v65 = vld [vmem:[%s64] sm:$0xff]
  %66 = vst [vmem:[%s63] sm:$0xff] %v65
  %s67 = scalar_lea.vmem %s2, 128
  %s68 = scalar_lea.vmem %s0, 128
  %v69 = vld [vmem:[%s68] sm:$0xff]
  %70 = vst [vmem:[%s67] sm:$0xff] %v69
  %s71 = scalar_lea.vmem %s2, 136
  %s72 = scalar_lea.vmem %s0, 136
  %v73 = vld [vmem:[%s72] sm:$0xff]
  %74 = vst [vmem:[%s71] sm:$0xff] %v73
  %v75 = vld [vmem:[%s1] sm:$0xff]
  %76 = vst [vmem:[%s4] sm:$0xff] %v75
  %s77 = scalar_lea.vmem %s4, 8
  %s78 = scalar_lea.vmem %s1, 8
  %v79 = vld [vmem:[%s78] sm:$0xff]
  %80 = vst [vmem:[%s77] sm:$0xff] %v79
  %s81 = scalar_lea.vmem %s4, 16
  %s82 = scalar_lea.vmem %s1, 16
  %v83 = vld [vmem:[%s82] sm:$0xff]
  %84 = vst [vmem:[%s81] sm:$0xff] %v83
  %s85 = scalar_lea.vmem %s4, 24
  %s86 = scalar_lea.vmem %s1, 24
  %v87 = vld [vmem:[%s86] sm:$0xff]
  %88 = vst [vmem:[%s85] sm:$0xff] %v87
  %s89 = scalar_lea.vmem %s4, 32
  %s90 = scalar_lea.vmem %s1, 32
  %v91 = vld [vmem:[%s90] sm:$0xff]
  %92 = vst [vmem:[%s89] sm:$0xff] %v91
  %s93 = scalar_lea.vmem %s4, 40
  %s94 = scalar_lea.vmem %s1, 40
  %v95 = vld [vmem:[%s94] sm:$0xff]
  %96 = vst [vmem:[%s93] sm:$0xff] %v95
  %s97 = scalar_lea.vmem %s4, 48
  %s98 = scalar_lea.vmem %s1, 48
  %v99 = vld [vmem:[%s98] sm:$0xff]
  %100 = vst [vmem:[%s97] sm:$0xff] %v99
  %s101 = scalar_lea.vmem %s4, 56
  %s102 = scalar_lea.vmem %s1, 56
  %v103 = vld [vmem:[%s102] sm:$0xff]
  %104 = vst [vmem:[%s101] sm:$0xff] %v103
  %s105 = scalar_lea.vmem %s4, 64
  %s106 = scalar_lea.vmem %s1, 64
  %v107 = vld [vmem:[%s106] sm:$0xff]
  %108 = vst [vmem:[%s105] sm:$0xff] %v107
  %s109 = scalar_lea.vmem %s4, 72
  %s110 = scalar_lea.vmem %s1, 72
  %v111 = vld [vmem:[%s110] sm:$0xff]
  %112 = vst [vmem:[%s109] sm:$0xff] %v111
  %s113 = scalar_lea.vmem %s4, 80
  %s114 = scalar_lea.vmem %s1, 80
  %v115 = vld [vmem:[%s114] sm:$0xff]
  %116 = vst [vmem:[%s113] sm:$0xff] %v115
  %s117 = scalar_lea.vmem %s4, 88
  %s118 = scalar_lea.vmem %s1, 88
  %v119 = vld [vmem:[%s118] sm:$0xff]
  %120 = vst [vmem:[%s117] sm:$0xff] %v119
  %s121 = scalar_lea.vmem %s4, 96
  %s122 = scalar_lea.vmem %s1, 96
  %v123 = vld [vmem:[%s122] sm:$0xff]
  %124 = vst [vmem:[%s121] sm:$0xff] %v123
  %s125 = scalar_lea.vmem %s4, 104
  %s126 = scalar_lea.vmem %s1, 104
  %v127 = vld [vmem:[%s126] sm:$0xff]
  %128 = vst [vmem:[%s125] sm:$0xff] %v127
  %s129 = scalar_lea.vmem %s4, 112
  %s130 = scalar_lea.vmem %s1, 112
  %v131 = vld [vmem:[%s130] sm:$0xff]
  %132 = vst [vmem:[%s129] sm:$0xff] %v131
  %s133 = scalar_lea.vmem %s4, 120
  %s134 = scalar_lea.vmem %s1, 120
  %v135 = vld [vmem:[%s134] sm:$0xff]
  %136 = vst [vmem:[%s133] sm:$0xff] %v135
  %s137 = scalar_lea.vmem %s4, 128
  %s138 = scalar_lea.vmem %s1, 128
  %v139 = vld [vmem:[%s138] sm:$0xff]
  %140 = vst [vmem:[%s137] sm:$0xff] %v139
  %s141 = scalar_lea.vmem %s4, 136
  %s142 = scalar_lea.vmem %s1, 136
  %v143 = vld [vmem:[%s142] sm:$0xff]
  %144 = vst [vmem:[%s141] sm:$0xff] %v143

// kernel: custom-call
$region0: #{custom-call}
  %s0 = inlined_call_operand.vmem [shape: f32[2,65,43], index: 0, kind: input, shape index: {}]
  %s1 = inlined_call_operand.vmem [shape: f32[2,65,43], index: 1, kind: input, shape index: {}]
  %s2 = inlined_call_operand.vmem [shape: c64[2,65,43], index: 2, kind: output, shape index: {}]
  %s4 = scalar_lea.vmem %s2, 96
  %v5 = vld [vmem:[%s0] sm:$0xff]
  %6 = vst [vmem:[%s2] sm:$0xff] %v5
  %s7 = scalar_lea.vmem %s2, 8
  %s8 = scalar_lea.vmem %s0, 8
  %v9 = vld [vmem:[%s8] sm:$0xff]
  %10 = vst [vmem:[%s7] sm:$0xff] %v9
  %s11 = scalar_lea.vmem %s2, 16
  %s12 = scalar_lea.vmem %s0, 16
  %v13 = vld [vmem:[%s12] sm:$0xff]
  %14 = vst [vmem:[%s11] sm:$0xff] %v13
  %s15 = scalar_lea.vmem %s2, 24
  %s16 = scalar_lea.vmem %s0, 24
  %v17 = vld [vmem:[%s16] sm:$0xff]
  %18 = vst [vmem:[%s15] sm:$0xff] %v17
  %s19 = scalar_lea.vmem %s2, 32
  %s20 = scalar_lea.vmem %s0, 32
  %v21 = vld [vmem:[%s20] sm:$0xff]
  %22 = vst [vmem:[%s19] sm:$0xff] %v21
  %s23 = scalar_lea.vmem %s2, 40
  %s24 = scalar_lea.vmem %s0, 40
  %v25 = vld [vmem:[%s24] sm:$0xff]
  %26 = vst [vmem:[%s23] sm:$0xff] %v25
  %s27 = scalar_lea.vmem %s2, 48
  %s28 = scalar_lea.vmem %s0, 48
  %v29 = vld [vmem:[%s28] sm:$0xff]
  %30 = vst [vmem:[%s27] sm:$0xff] %v29
  %s31 = scalar_lea.vmem %s2, 56
  %s32 = scalar_lea.vmem %s0, 56
  %v33 = vld [vmem:[%s32] sm:$0xff]
  %34 = vst [vmem:[%s31] sm:$0xff] %v33
  %s35 = scalar_lea.vmem %s2, 64
  %s36 = scalar_lea.vmem %s0, 64
  %v37 = vld [vmem:[%s36] sm:$0xff]
  %38 = vst [vmem:[%s35] sm:$0xff] %v37
  %s39 = scalar_lea.vmem %s2, 72
  %s40 = scalar_lea.vmem %s0, 72
  %v41 = vld [vmem:[%s40] sm:$0xff]
  %42 = vst [vmem:[%s39] sm:$0xff] %v41
  %s43 = scalar_lea.vmem %s2, 80
  %s44 = scalar_lea.vmem %s0, 80
  %v45 = vld [vmem:[%s44] sm:$0xff]
  %46 = vst [vmem:[%s43] sm:$0xff] %v45
  %s47 = scalar_lea.vmem %s2, 88
  %s48 = scalar_lea.vmem %s0, 88
  %v49 = vld [vmem:[%s48] sm:$0xff]
  %50 = vst [vmem:[%s47] sm:$0xff] %v49
  %v51 = vld [vmem:[%s1] sm:$0xff]
  %52 = vst [vmem:[%s4] sm:$0xff] %v51
  %s53 = scalar_lea.vmem %s4, 8
  %s54 = scalar_lea.vmem %s1, 8
  %v55 = vld [vmem:[%s54] sm:$0xff]
  %56 = vst [vmem:[%s53] sm:$0xff] %v55
  %s57 = scalar_lea.vmem %s4, 16
  %s58 = scalar_lea.vmem %s1, 16
  %v59 = vld [vmem:[%s58] sm:$0xff]
  %60 = vst [vmem:[%s57] sm:$0xff] %v59
  %s61 = scalar_lea.vmem %s4, 24
  %s62 = scalar_lea.vmem %s1, 24
  %v63 = vld [vmem:[%s62] sm:$0xff]
  %64 = vst [vmem:[%s61] sm:$0xff] %v63
  %s65 = scalar_lea.vmem %s4, 32
  %s66 = scalar_lea.vmem %s1, 32
  %v67 = vld [vmem:[%s66] sm:$0xff]
  %68 = vst [vmem:[%s65] sm:$0xff] %v67
  %s69 = scalar_lea.vmem %s4, 40
  %s70 = scalar_lea.vmem %s1, 40
  %v71 = vld [vmem:[%s70] sm:$0xff]
  %72 = vst [vmem:[%s69] sm:$0xff] %v71
  %s73 = scalar_lea.vmem %s4, 48
  %s74 = scalar_lea.vmem %s1, 48
  %v75 = vld [vmem:[%s74] sm:$0xff]
  %76 = vst [vmem:[%s73] sm:$0xff] %v75
  %s77 = scalar_lea.vmem %s4, 56
  %s78 = scalar_lea.vmem %s1, 56
  %v79 = vld [vmem:[%s78] sm:$0xff]
  %80 = vst [vmem:[%s77] sm:$0xff] %v79
  %s81 = scalar_lea.vmem %s4, 64
  %s82 = scalar_lea.vmem %s1, 64
  %v83 = vld [vmem:[%s82] sm:$0xff]
  %84 = vst [vmem:[%s81] sm:$0xff] %v83
  %s85 = scalar_lea.vmem %s4, 72
  %s86 = scalar_lea.vmem %s1, 72
  %v87 = vld [vmem:[%s86] sm:$0xff]
  %88 = vst [vmem:[%s85] sm:$0xff] %v87
  %s89 = scalar_lea.vmem %s4, 80
  %s90 = scalar_lea.vmem %s1, 80
  %v91 = vld [vmem:[%s90] sm:$0xff]
  %92 = vst [vmem:[%s89] sm:$0xff] %v91
  %s93 = scalar_lea.vmem %s4, 88
  %s94 = scalar_lea.vmem %s1, 88
  %v95 = vld [vmem:[%s94] sm:$0xff]
  %96 = vst [vmem:[%s93] sm:$0xff] %v95

// kernel: model_forward.1
$region0: #{model_forward.1}
  #allocation0 [shape = 'u32[]', space=smem, size = 0x4, offset = 0x4, fixed_abs, tag = 'smem constant byte address 0x4 - core index']
  #allocation1 [shape = 'u32[144,128]{1,0:T(1,128)}', space=vmem, size = 0x12000, scoped, tag = 'internal scratch']
  #allocation2 [shape = 's32[1]{0}', space=sflag, size = 0x4, scoped, tag = 'scoped memory for model_forward.1']
  #allocation3 [shape = 'u8[512]{0}', space=smem, size = 0x200, scoped, tag = 'prefetched SMEM operand 0']
  #allocation4 [shape = 'u8[512]{0}', space=smem, size = 0x200, scoped, tag = 'prefetched SMEM operand 1']
  %s0 = inlined_call_operand.vmem [shape: s32[12], index: 0, kind: input, shape index: {}]
  %s1 = inlined_call_operand.vmem [shape: s32[12], index: 1, kind: input, shape index: {}]
  %s2 = inlined_call_operand.vmem [shape: f32[384,512], index: 2, kind: input, shape index: {}]
  %s3 = inlined_call_operand.vmem [shape: f32[4,512,1024], index: 3, kind: input, shape index: {}]
  %s4 = inlined_call_operand.vmem [shape: f32[384,1024], index: 4, kind: output, shape index: {}]
  %s5 = sld [smem:[#allocation0]]
  $region41: #{model_forward.1} parent=0
    _
  %s7 = ssub.s32 1, %s5
  %s8 = scalar_select 0, %s7, %s5
  %s9 = sshll.u32 %s0, 4
  %s10 = int_to_ptr.vmem [resolvable:$true] %s9
  %12 = dma.vmem_to_smem %s10, 16, [#allocation3], [#allocation2]
  %s13 = sshll.u32 %s1, 4
  %s14 = int_to_ptr.vmem [resolvable:$true] %s13
  %16 = dma.vmem_to_smem %s14, 16, [#allocation4], [#allocation2]
  %17 = dma.done [#allocation2], 32
  %18 = sfence
  loop: start=0, step=1, limit=14
  $region2: #{model_forward.1} parent=0 // loop_pre_header
    _
  $region3: #{model_forward.1} parent=0 // loop_header
    %s20 = sphi 0, %s24
    %p21 = scmp.ge.s32.totalorder %s20, 14
    %s30 = sphi 0, %s32
    %s33 = sphi 0, %s30
    %s34 = sphi 0, %s33
    %s50 = sphi 0, %s34
    %s58 = sphi 0, %s60
    %s61 = sphi 0, %s58
    %s62 = sphi 0, %s61
    %s78 = sphi 0, %s62
    %s84 = sphi 0, %s86
    %s87 = sphi 0, %s84
    %s88 = sphi 0, %s87
    %s104 = sphi 0, %s88
  $region4: #{model_forward.1} parent=0 // loop_header_branch
    %23 = sbr.rel (%p21) target = $region8
  $region5: #{model_forward.1} parent=0 // loop_body
    %s25 = ssub.s32 %s20, 1
    %s26 = ssub.s32 %s20, 2
    %s27 = sadd.s32 %s20, 1
    %s28 = ssub.s32 %s20, %s27
    %p29 = scmp.eq.s32.totalorder %s28, 0
    %s31 = sadd.s32 %s30, 1
    %s32 = scalar_select %p29, %s30, %s31
    %p35 = pneg %p29
    %p36 = scmp.eq.s32.totalorder %s20, 11
    %p37 = por %p35, %p36
    %p38 = scmp.ne.s32.totalorder %s30, %s33
    %p39 = scmp.eq.s32.totalorder %s20, 0
    %p40 = por %p38, %p39
    %p41 = scmp.ne.s32.totalorder %s30, %s33
    %p42 = scmp.eq.s32.totalorder %s25, 11
    %p43 = por %p41, %p42
    %p44 = scmp.ne.s32.totalorder %s33, %s34
    %p45 = scmp.eq.s32.totalorder %s25, 0
    %p46 = por %p44, %p45
    %p47 = scmp.ne.s32.totalorder %s33, %s34
    %p48 = scmp.eq.s32.totalorder %s26, 11
    %p49 = por %p47, %p48
    %p51 = scmp.ne.s32.totalorder %s34, %s50
    %p52 = scmp.eq.s32.totalorder %s26, 0
    %p53 = por %p51, %p52
    %s54 = sld [smem:[#allocation3 + %s20]]
    %s55 = sld [smem:[#allocation3 + %s27]]
    %s56 = ssub.s32 %s54, %s55
    %p57 = scmp.eq.s32.totalorder %s56, 0
    %s59 = sadd.s32 %s58, 1
    %s60 = scalar_select %p57, %s58, %s59
    %p63 = pneg %p57
    %p64 = scmp.eq.s32.totalorder %s20, 11
    %p65 = por %p63, %p64
    %p66 = scmp.ne.s32.totalorder %s58, %s61
    %p67 = scmp.eq.s32.totalorder %s20, 0
    %p68 = por %p66, %p67
    %p69 = scmp.ne.s32.totalorder %s58, %s61
    %p70 = scmp.eq.s32.totalorder %s25, 11
    %p71 = por %p69, %p70
    %p72 = scmp.ne.s32.totalorder %s61, %s62
    %p73 = scmp.eq.s32.totalorder %s25, 0
    %p74 = por %p72, %p73
    %p75 = scmp.ne.s32.totalorder %s61, %s62
    %p76 = scmp.eq.s32.totalorder %s26, 11
    %p77 = por %p75, %p76
    %p79 = scmp.ne.s32.totalorder %s62, %s78
    %p80 = scmp.eq.s32.totalorder %s26, 0
    %p81 = por %p79, %p80
    %s82 = ssub.s32 %s20, %s27
    %p83 = scmp.eq.s32.totalorder %s82, 0
    %s85 = sadd.s32 %s84, 1
    %s86 = scalar_select %p83, %s84, %s85
    %p89 = pneg %p83
    %p90 = scmp.eq.s32.totalorder %s20, 11
    %p91 = por %p89, %p90
    %p92 = scmp.ne.s32.totalorder %s84, %s87
    %p93 = scmp.eq.s32.totalorder %s20, 0
    %p94 = por %p92, %p93
    %p95 = scmp.ne.s32.totalorder %s84, %s87
    %p96 = scmp.eq.s32.totalorder %s25, 11
    %p97 = por %p95, %p96
    %p98 = scmp.ne.s32.totalorder %s87, %s88
    %p99 = scmp.eq.s32.totalorder %s25, 0
    %p100 = por %p98, %p99
    %p101 = scmp.ne.s32.totalorder %s87, %s88
    %p102 = scmp.eq.s32.totalorder %s26, 11
    %p103 = por %p101, %p102
    %p105 = scmp.ne.s32.totalorder %s88, %s104
    %p106 = scmp.eq.s32.totalorder %s26, 0
    %p107 = por %p105, %p106
    %p108 = scmp.le.s32.totalorder 1, %s20
    %p109 = scmp.lt.s32.totalorder %s20, 13
    %p110 = pnand %p108, %p109
    %p111 = pneg %p110
    // Predicated region
    $region9: #{model_forward.1} parent=5 // pred_check
      _
    $region10: #{model_forward.1} parent=5 // pred_check_branch
      %113 = sbr.rel (%p110) target = $region12
    $region11: #{model_forward.1} parent=5 // pred_region
      %s114 = ssub.s32 %s20, 1
    $region12: #{model_forward.1} parent=5 // pred_fallthru
      _
    %p115 = scmp.lt.s32.totalorder %s20, 12
    // Predicated region
    $region13: #{model_forward.1} parent=5 // pred_check
      %p116 = pneg %p115
    $region14: #{model_forward.1} parent=5 // pred_check_branch
      %118 = sbr.rel (%p116) target = $region16
    $region15: #{model_forward.1} parent=5 // pred_region
      // Predicated region
      $region17: #{model_forward.1} parent=15 // pred_check
        %p119 = pneg %p40
      $region18: #{model_forward.1} parent=15 // pred_check_branch
        %121 = sbr.rel (%p119) target = $region20
      $region19: #{model_forward.1} parent=15 // pred_region
        %s122 = smul.u32 4, %s20
        %p123 = scmp.lt.s32.totalorder %s122, 47
        %s124 = scalar_select %p123, %s122, 47
        %s125 = smul.addr %s124, 4
        %s126 = smul.addr %s125, 8
        %s127 = scalar_lea.vmem %s2, %s126
        %s128 = smul.u32 4, %s20
      $region20: #{model_forward.1} parent=15 // pred_fallthru
        _
      // Predicated region
      $region21: #{model_forward.1} parent=15 // pred_check
        %p129 = pneg %p68
      $region22: #{model_forward.1} parent=15 // pred_check_branch
        %131 = sbr.rel (%p129) target = $region24
      $region23: #{model_forward.1} parent=15 // pred_region
        %s132 = sld [smem:[#allocation3 + %s20]]
        %p133 = scmp.lt.s32.totalorder %s132, 3
        %s134 = scalar_select %p133, %s132, 3
        %s135 = smul.addr %s134, 512
        %s136 = smul.addr %s135, 8
        %s137 = scalar_lea.vmem %s3, %s136
        %s138 = sld [smem:[#allocation3 + %s20]]
      $region24: #{model_forward.1} parent=15 // pred_fallthru
        _
    $region16: #{model_forward.1} parent=5 // pred_fallthru
      _
    %p139 = scmp.le.s32.totalorder 1, %s20
    %p140 = scmp.lt.s32.totalorder %s20, 13
    %p141 = pnand %p139, %p140
    %p142 = pneg %p141
    // Predicated region
    $region25: #{model_forward.1} parent=5 // pred_check
      _
    $region26: #{model_forward.1} parent=5 // pred_check_branch
      %144 = sbr.rel (%p141) target = $region28
    $region27: #{model_forward.1} parent=5 // pred_region
      %s145 = ssub.s32 %s20, 1
      %s146 = smul.u32 4, %s25
      %p147 = scmp.lt.s32.totalorder %s146, 47
      %s148 = scalar_select %p147, %s146, 47
      %s149 = smul.addr %s148, 4
      %s150 = smul.addr %s149, 8
      %s151 = scalar_lea.vmem %s2, %s150
      %p152 = pneg %p46
      %p153 = pneg %p43
      %s154 = sld [smem:[#allocation3 + %s25]]
      %p155 = scmp.lt.s32.totalorder %s154, 3
      %s156 = scalar_select %p155, %s154, 3
      %s157 = smul.addr %s156, 512
      %s158 = smul.addr %s157, 8
      %s159 = scalar_lea.vmem %s3, %s158
      %p160 = pneg %p74
      %p161 = pneg %p71
      %p162 = pneg %p100
      %p163 = pneg %p97
      %s164 = smul.u32 4, %s25
      %p165 = scmp.lt.s32.totalorder %s164, 47
      %s166 = scalar_select %p165, %s164, 47
      %s167 = smul.addr %s166, 8
      %s168 = smul.addr %s167, 8
      %s169 = scalar_lea.vmem %s4, %s168
      %s170 = smul.u32 4, %s25
      %p171 = scmp.lt.s32.totalorder %s170, 47
      %s172 = scalar_select %p171, %s170, 47
      %s173 = smul.addr %s172, 4
      %s174 = smul.addr %s173, 8
      %s175 = scalar_lea.vmem %s2, %s174
      %s176 = smul.u32 4, %s25
      %s177 = sld [smem:[#allocation3 + %s25]]
      %p178 = scmp.lt.s32.totalorder %s177, 3
      %s179 = scalar_select %p178, %s177, 3
      %s180 = smul.addr %s179, 512
      %s181 = smul.addr %s180, 8
      %s182 = scalar_lea.vmem %s3, %s181
      %s183 = sld [smem:[#allocation3 + %s25]]
      %s184 = smul.u32 4, %s25
      %p185 = scmp.lt.s32.totalorder %s184, 47
      %s186 = scalar_select %p185, %s184, 47
      %s187 = smul.addr %s186, 8
      %s188 = smul.addr %s187, 8
      %s189 = scalar_lea.vmem %s4, %s188
      %s190 = smul.u32 4, %s25
      %s191 = sld [smem:[#allocation4 + %s25]]
      %v192 = vld [vmem:[%s175] sm:$0xff]
      %v193 = vld [vmem:[%s175 + $0x8] sm:$0xff]
      %v194 = vld [vmem:[%s175 + $0x10] sm:$0xff]
      %v195 = vld [vmem:[%s175 + $0x18] sm:$0xff]
      %v196 = vld [vmem:[%s175 + $0x20] sm:$0xff]
      %v197 = vld [vmem:[%s175 + $0x28] sm:$0xff]
      %v198 = vld [vmem:[%s175 + $0x30] sm:$0xff]
      %v199 = vld [vmem:[%s175 + $0x38] sm:$0xff]
      %v200 = vld [vmem:[%s175 + $0x40] sm:$0xff]
      %v201 = vld [vmem:[%s175 + $0x48] sm:$0xff]
      %v202 = vld [vmem:[%s175 + $0x50] sm:$0xff]
      %v203 = vld [vmem:[%s175 + $0x58] sm:$0xff]
      %v204 = vld [vmem:[%s175 + $0x60] sm:$0xff]
      %v205 = vld [vmem:[%s175 + $0x68] sm:$0xff]
      %v206 = vld [vmem:[%s175 + $0x70] sm:$0xff]
      %v207 = vld [vmem:[%s175 + $0x78] sm:$0xff]
      %v208 = vld [vmem:[%s182] sm:$0xff]
      %v209 = vld [vmem:[%s182 + $0x8] sm:$0xff]
      %v210 = vld [vmem:[%s182 + $0x10] sm:$0xff]
      %v211 = vld [vmem:[%s182 + $0x18] sm:$0xff]
      %v212 = vld [vmem:[%s182 + $0x20] sm:$0xff]
      %v213 = vld [vmem:[%s182 + $0x28] sm:$0xff]
      %v214 = vld [vmem:[%s182 + $0x30] sm:$0xff]
      %v215 = vld [vmem:[%s182 + $0x38] sm:$0xff]
      %v216 = vld [vmem:[%s182 + $0x40] sm:$0xff]
      %v217 = vld [vmem:[%s182 + $0x48] sm:$0xff]
      %v218 = vld [vmem:[%s182 + $0x50] sm:$0xff]
      %v219 = vld [vmem:[%s182 + $0x58] sm:$0xff]
      %v220 = vld [vmem:[%s182 + $0x60] sm:$0xff]
      %v221 = vld [vmem:[%s182 + $0x68] sm:$0xff]
      %v222 = vld [vmem:[%s182 + $0x70] sm:$0xff]
      %v223 = vld [vmem:[%s182 + $0x78] sm:$0xff]
      %v224 = vld [vmem:[%s182 + $0x80] sm:$0xff]
      %v225 = vld [vmem:[%s182 + $0x88] sm:$0xff]
      %v226 = vld [vmem:[%s182 + $0x90] sm:$0xff]
      %v227 = vld [vmem:[%s182 + $0x98] sm:$0xff]
      %v228 = vld [vmem:[%s182 + $0xa0] sm:$0xff]
      %v229 = vld [vmem:[%s182 + $0xa8] sm:$0xff]
      %v230 = vld [vmem:[%s182 + $0xb0] sm:$0xff]
      %v231 = vld [vmem:[%s182 + $0xb8] sm:$0xff]
      %v232 = vld [vmem:[%s182 + $0xc0] sm:$0xff]
      %v233 = vld [vmem:[%s182 + $0xc8] sm:$0xff]
      %v234 = vld [vmem:[%s182 + $0xd0] sm:$0xff]
      %v235 = vld [vmem:[%s182 + $0xd8] sm:$0xff]
      %v236 = vld [vmem:[%s182 + $0xe0] sm:$0xff]
      %v237 = vld [vmem:[%s182 + $0xe8] sm:$0xff]
      %v238 = vld [vmem:[%s182 + $0xf0] sm:$0xff]
      %v239 = vld [vmem:[%s182 + $0xf8] sm:$0xff]
      %v240 = vld [vmem:[%s182 + $0x100] sm:$0xff]
      %v241 = vld [vmem:[%s182 + $0x108] sm:$0xff]
      %v242 = vld [vmem:[%s182 + $0x110] sm:$0xff]
      %v243 = vld [vmem:[%s182 + $0x118] sm:$0xff]
      %v244 = vld [vmem:[%s182 + $0x120] sm:$0xff]
      %v245 = vld [vmem:[%s182 + $0x128] sm:$0xff]
      %v246 = vld [vmem:[%s182 + $0x130] sm:$0xff]
      %v247 = vld [vmem:[%s182 + $0x138] sm:$0xff]
      %v248 = vld [vmem:[%s182 + $0x140] sm:$0xff]
      %v249 = vld [vmem:[%s182 + $0x148] sm:$0xff]
      %v250 = vld [vmem:[%s182 + $0x150] sm:$0xff]
      %v251 = vld [vmem:[%s182 + $0x158] sm:$0xff]
      %v252 = vld [vmem:[%s182 + $0x160] sm:$0xff]
      %v253 = vld [vmem:[%s182 + $0x168] sm:$0xff]
      %v254 = vld [vmem:[%s182 + $0x170] sm:$0xff]
      %v255 = vld [vmem:[%s182 + $0x178] sm:$0xff]
      %v256 = vld [vmem:[%s182 + $0x180] sm:$0xff]
      %v257 = vld [vmem:[%s182 + $0x188] sm:$0xff]
      %v258 = vld [vmem:[%s182 + $0x190] sm:$0xff]
      %v259 = vld [vmem:[%s182 + $0x198] sm:$0xff]
      %v260 = vld [vmem:[%s182 + $0x1a0] sm:$0xff]
      %v261 = vld [vmem:[%s182 + $0x1a8] sm:$0xff]
      %v262 = vld [vmem:[%s182 + $0x1b0] sm:$0xff]
      %v263 = vld [vmem:[%s182 + $0x1b8] sm:$0xff]
      %v264 = vld [vmem:[%s182 + $0x1c0] sm:$0xff]
      %v265 = vld [vmem:[%s182 + $0x1c8] sm:$0xff]
      %v266 = vld [vmem:[%s182 + $0x1d0] sm:$0xff]
      %v267 = vld [vmem:[%s182 + $0x1d8] sm:$0xff]
      %v268 = vld [vmem:[%s182 + $0x1e0] sm:$0xff]
      %v269 = vld [vmem:[%s182 + $0x1e8] sm:$0xff]
      %v270 = vld [vmem:[%s182 + $0x1f0] sm:$0xff]
      %v271 = vld [vmem:[%s182 + $0x1f8] sm:$0xff]
      %v272 = vld [vmem:[%s182 + $0x200] sm:$0xff]
      %v273 = vld [vmem:[%s182 + $0x208] sm:$0xff]
      %v274 = vld [vmem:[%s182 + $0x210] sm:$0xff]
      %v275 = vld [vmem:[%s182 + $0x218] sm:$0xff]
      %v276 = vld [vmem:[%s182 + $0x220] sm:$0xff]
      %v277 = vld [vmem:[%s182 + $0x228] sm:$0xff]
      %v278 = vld [vmem:[%s182 + $0x230] sm:$0xff]
      %v279 = vld [vmem:[%s182 + $0x238] sm:$0xff]
      %v280 = vld [vmem:[%s182 + $0x240] sm:$0xff]
      %v281 = vld [vmem:[%s182 + $0x248] sm:$0xff]
      %v282 = vld [vmem:[%s182 + $0x250] sm:$0xff]
      %v283 = vld [vmem:[%s182 + $0x258] sm:$0xff]
      %v284 = vld [vmem:[%s182 + $0x260] sm:$0xff]
      %v285 = vld [vmem:[%s182 + $0x268] sm:$0xff]
      %v286 = vld [vmem:[%s182 + $0x270] sm:$0xff]
      %v287 = vld [vmem:[%s182 + $0x278] sm:$0xff]
      %v288 = vld [vmem:[%s182 + $0x280] sm:$0xff]
      %v289 = vld [vmem:[%s182 + $0x288] sm:$0xff]
      %v290 = vld [vmem:[%s182 + $0x290] sm:$0xff]
      %v291 = vld [vmem:[%s182 + $0x298] sm:$0xff]
      %v292 = vld [vmem:[%s182 + $0x2a0] sm:$0xff]
      %v293 = vld [vmem:[%s182 + $0x2a8] sm:$0xff]
      %v294 = vld [vmem:[%s182 + $0x2b0] sm:$0xff]
      %v295 = vld [vmem:[%s182 + $0x2b8] sm:$0xff]
      %v296 = vld [vmem:[%s182 + $0x2c0] sm:$0xff]
      %v297 = vld [vmem:[%s182 + $0x2c8] sm:$0xff]
      %v298 = vld [vmem:[%s182 + $0x2d0] sm:$0xff]
      %v299 = vld [vmem:[%s182 + $0x2d8] sm:$0xff]
      %v300 = vld [vmem:[%s182 + $0x2e0] sm:$0xff]
      %v301 = vld [vmem:[%s182 + $0x2e8] sm:$0xff]
      %v302 = vld [vmem:[%s182 + $0x2f0] sm:$0xff]
      %v303 = vld [vmem:[%s182 + $0x2f8] sm:$0xff]
      %v304 = vld [vmem:[%s182 + $0x300] sm:$0xff]
      %v305 = vld [vmem:[%s182 + $0x308] sm:$0xff]
      %v306 = vld [vmem:[%s182 + $0x310] sm:$0xff]
      %v307 = vld [vmem:[%s182 + $0x318] sm:$0xff]
      %v308 = vld [vmem:[%s182 + $0x320] sm:$0xff]
      %v309 = vld [vmem:[%s182 + $0x328] sm:$0xff]
      %v310 = vld [vmem:[%s182 + $0x330] sm:$0xff]
      %v311 = vld [vmem:[%s182 + $0x338] sm:$0xff]
      %v312 = vld [vmem:[%s182 + $0x340] sm:$0xff]
      %v313 = vld [vmem:[%s182 + $0x348] sm:$0xff]
      %v314 = vld [vmem:[%s182 + $0x350] sm:$0xff]
      %v315 = vld [vmem:[%s182 + $0x358] sm:$0xff]
      %v316 = vld [vmem:[%s182 + $0x360] sm:$0xff]
      %v317 = vld [vmem:[%s182 + $0x368] sm:$0xff]
      %v318 = vld [vmem:[%s182 + $0x370] sm:$0xff]
      %v319 = vld [vmem:[%s182 + $0x378] sm:$0xff]
      %v320 = vld [vmem:[%s182 + $0x380] sm:$0xff]
      %v321 = vld [vmem:[%s182 + $0x388] sm:$0xff]
      %v322 = vld [vmem:[%s182 + $0x390] sm:$0xff]
      %v323 = vld [vmem:[%s182 + $0x398] sm:$0xff]
      %v324 = vld [vmem:[%s182 + $0x3a0] sm:$0xff]
      %v325 = vld [vmem:[%s182 + $0x3a8] sm:$0xff]
      %v326 = vld [vmem:[%s182 + $0x3b0] sm:$0xff]
      %v327 = vld [vmem:[%s182 + $0x3b8] sm:$0xff]
      %v328 = vld [vmem:[%s182 + $0x3c0] sm:$0xff]
      %v329 = vld [vmem:[%s182 + $0x3c8] sm:$0xff]
      %v330 = vld [vmem:[%s182 + $0x3d0] sm:$0xff]
      %v331 = vld [vmem:[%s182 + $0x3d8] sm:$0xff]
      %v332 = vld [vmem:[%s182 + $0x3e0] sm:$0xff]
      %v333 = vld [vmem:[%s182 + $0x3e8] sm:$0xff]
      %v334 = vld [vmem:[%s182 + $0x3f0] sm:$0xff]
      %v335 = vld [vmem:[%s182 + $0x3f8] sm:$0xff]
      %v336 = vld [vmem:[%s182 + $0x400] sm:$0xff]
      %v337 = vld [vmem:[%s182 + $0x408] sm:$0xff]
      %v338 = vld [vmem:[%s182 + $0x410] sm:$0xff]
      %v339 = vld [vmem:[%s182 + $0x418] sm:$0xff]
      %v340 = vld [vmem:[%s182 + $0x420] sm:$0xff]
      %v341 = vld [vmem:[%s182 + $0x428] sm:$0xff]
      %v342 = vld [vmem:[%s182 + $0x430] sm:$0xff]
      %v343 = vld [vmem:[%s182 + $0x438] sm:$0xff]
      %v344 = vld [vmem:[%s182 + $0x440] sm:$0xff]
      %v345 = vld [vmem:[%s182 + $0x448] sm:$0xff]
      %v346 = vld [vmem:[%s182 + $0x450] sm:$0xff]
      %v347 = vld [vmem:[%s182 + $0x458] sm:$0xff]
      %v348 = vld [vmem:[%s182 + $0x460] sm:$0xff]
      %v349 = vld [vmem:[%s182 + $0x468] sm:$0xff]
      %v350 = vld [vmem:[%s182 + $0x470] sm:$0xff]
      %v351 = vld [vmem:[%s182 + $0x478] sm:$0xff]
      %v352 = vld [vmem:[%s182 + $0x480] sm:$0xff]
      %v353 = vld [vmem:[%s182 + $0x488] sm:$0xff]
      %v354 = vld [vmem:[%s182 + $0x490] sm:$0xff]
      %v355 = vld [vmem:[%s182 + $0x498] sm:$0xff]
      %v356 = vld [vmem:[%s182 + $0x4a0] sm:$0xff]
      %v357 = vld [vmem:[%s182 + $0x4a8] sm:$0xff]
      %v358 = vld [vmem:[%s182 + $0x4b0] sm:$0xff]
      %v359 = vld [vmem:[%s182 + $0x4b8] sm:$0xff]
      %v360 = vld [vmem:[%s182 + $0x4c0] sm:$0xff]
      %v361 = vld [vmem:[%s182 + $0x4c8] sm:$0xff]
      %v362 = vld [vmem:[%s182 + $0x4d0] sm:$0xff]
      %v363 = vld [vmem:[%s182 + $0x4d8] sm:$0xff]
      %v364 = vld [vmem:[%s182 + $0x4e0] sm:$0xff]
      %v365 = vld [vmem:[%s182 + $0x4e8] sm:$0xff]
      %v366 = vld [vmem:[%s182 + $0x4f0] sm:$0xff]
      %v367 = vld [vmem:[%s182 + $0x4f8] sm:$0xff]
      %v368 = vld [vmem:[%s182 + $0x500] sm:$0xff]
      %v369 = vld [vmem:[%s182 + $0x508] sm:$0xff]
      %v370 = vld [vmem:[%s182 + $0x510] sm:$0xff]
      %v371 = vld [vmem:[%s182 + $0x518] sm:$0xff]
      %v372 = vld [vmem:[%s182 + $0x520] sm:$0xff]
      %v373 = vld [vmem:[%s182 + $0x528] sm:$0xff]
      %v374 = vld [vmem:[%s182 + $0x530] sm:$0xff]
      %v375 = vld [vmem:[%s182 + $0x538] sm:$0xff]
      %v376 = vld [vmem:[%s182 + $0x540] sm:$0xff]
      %v377 = vld [vmem:[%s182 + $0x548] sm:$0xff]
      %v378 = vld [vmem:[%s182 + $0x550] sm:$0xff]
      %v379 = vld [vmem:[%s182 + $0x558] sm:$0xff]
      %v380 = vld [vmem:[%s182 + $0x560] sm:$0xff]
      %v381 = vld [vmem:[%s182 + $0x568] sm:$0xff]
      %v382 = vld [vmem:[%s182 + $0x570] sm:$0xff]
      %v383 = vld [vmem:[%s182 + $0x578] sm:$0xff]
      %v384 = vld [vmem:[%s182 + $0x580] sm:$0xff]
      %v385 = vld [vmem:[%s182 + $0x588] sm:$0xff]
      %v386 = vld [vmem:[%s182 + $0x590] sm:$0xff]
      %v387 = vld [vmem:[%s182 + $0x598] sm:$0xff]
      %v388 = vld [vmem:[%s182 + $0x5a0] sm:$0xff]
      %v389 = vld [vmem:[%s182 + $0x5a8] sm:$0xff]
      %v390 = vld [vmem:[%s182 + $0x5b0] sm:$0xff]
      %v391 = vld [vmem:[%s182 + $0x5b8] sm:$0xff]
      %v392 = vld [vmem:[%s182 + $0x5c0] sm:$0xff]
      %v393 = vld [vmem:[%s182 + $0x5c8] sm:$0xff]
      %v394 = vld [vmem:[%s182 + $0x5d0] sm:$0xff]
      %v395 = vld [vmem:[%s182 + $0x5d8] sm:$0xff]
      %v396 = vld [vmem:[%s182 + $0x5e0] sm:$0xff]
      %v397 = vld [vmem:[%s182 + $0x5e8] sm:$0xff]
      %v398 = vld [vmem:[%s182 + $0x5f0] sm:$0xff]
      %v399 = vld [vmem:[%s182 + $0x5f8] sm:$0xff]
      %v400 = vld [vmem:[%s182 + $0x600] sm:$0xff]
      %v401 = vld [vmem:[%s182 + $0x608] sm:$0xff]
      %v402 = vld [vmem:[%s182 + $0x610] sm:$0xff]
      %v403 = vld [vmem:[%s182 + $0x618] sm:$0xff]
      %v404 = vld [vmem:[%s182 + $0x620] sm:$0xff]
      %v405 = vld [vmem:[%s182 + $0x628] sm:$0xff]
      %v406 = vld [vmem:[%s182 + $0x630] sm:$0xff]
      %v407 = vld [vmem:[%s182 + $0x638] sm:$0xff]
      %v408 = vld [vmem:[%s182 + $0x640] sm:$0xff]
      %v409 = vld [vmem:[%s182 + $0x648] sm:$0xff]
      %v410 = vld [vmem:[%s182 + $0x650] sm:$0xff]
      %v411 = vld [vmem:[%s182 + $0x658] sm:$0xff]
      %v412 = vld [vmem:[%s182 + $0x660] sm:$0xff]
      %v413 = vld [vmem:[%s182 + $0x668] sm:$0xff]
      %v414 = vld [vmem:[%s182 + $0x670] sm:$0xff]
      %v415 = vld [vmem:[%s182 + $0x678] sm:$0xff]
      %v416 = vld [vmem:[%s182 + $0x680] sm:$0xff]
      %v417 = vld [vmem:[%s182 + $0x688] sm:$0xff]
      %v418 = vld [vmem:[%s182 + $0x690] sm:$0xff]
      %v419 = vld [vmem:[%s182 + $0x698] sm:$0xff]
      %v420 = vld [vmem:[%s182 + $0x6a0] sm:$0xff]
      %v421 = vld [vmem:[%s182 + $0x6a8] sm:$0xff]
      %v422 = vld [vmem:[%s182 + $0x6b0] sm:$0xff]
      %v423 = vld [vmem:[%s182 + $0x6b8] sm:$0xff]
      %v424 = vld [vmem:[%s182 + $0x6c0] sm:$0xff]
      %v425 = vld [vmem:[%s182 + $0x6c8] sm:$0xff]
      %v426 = vld [vmem:[%s182 + $0x6d0] sm:$0xff]
      %v427 = vld [vmem:[%s182 + $0x6d8] sm:$0xff]
      %v428 = vld [vmem:[%s182 + $0x6e0] sm:$0xff]
      %v429 = vld [vmem:[%s182 + $0x6e8] sm:$0xff]
      %v430 = vld [vmem:[%s182 + $0x6f0] sm:$0xff]
      %v431 = vld [vmem:[%s182 + $0x6f8] sm:$0xff]
      %v432 = vld [vmem:[%s182 + $0x700] sm:$0xff]
      %v433 = vld [vmem:[%s182 + $0x708] sm:$0xff]
      %v434 = vld [vmem:[%s182 + $0x710] sm:$0xff]
      %v435 = vld [vmem:[%s182 + $0x718] sm:$0xff]
      %v436 = vld [vmem:[%s182 + $0x720] sm:$0xff]
      %v437 = vld [vmem:[%s182 + $0x728] sm:$0xff]
      %v438 = vld [vmem:[%s182 + $0x730] sm:$0xff]
      %v439 = vld [vmem:[%s182 + $0x738] sm:$0xff]
      %v440 = vld [vmem:[%s182 + $0x740] sm:$0xff]
      %v441 = vld [vmem:[%s182 + $0x748] sm:$0xff]
      %v442 = vld [vmem:[%s182 + $0x750] sm:$0xff]
      %v443 = vld [vmem:[%s182 + $0x758] sm:$0xff]
      %v444 = vld [vmem:[%s182 + $0x760] sm:$0xff]
      %v445 = vld [vmem:[%s182 + $0x768] sm:$0xff]
      %v446 = vld [vmem:[%s182 + $0x770] sm:$0xff]
      %v447 = vld [vmem:[%s182 + $0x778] sm:$0xff]
      %v448 = vld [vmem:[%s182 + $0x780] sm:$0xff]
      %v449 = vld [vmem:[%s182 + $0x788] sm:$0xff]
      %v450 = vld [vmem:[%s182 + $0x790] sm:$0xff]
      %v451 = vld [vmem:[%s182 + $0x798] sm:$0xff]
      %v452 = vld [vmem:[%s182 + $0x7a0] sm:$0xff]
      %v453 = vld [vmem:[%s182 + $0x7a8] sm:$0xff]
      %v454 = vld [vmem:[%s182 + $0x7b0] sm:$0xff]
      %v455 = vld [vmem:[%s182 + $0x7b8] sm:$0xff]
      %v456 = vld [vmem:[%s182 + $0x7c0] sm:$0xff]
      %v457 = vld [vmem:[%s182 + $0x7c8] sm:$0xff]
      %v458 = vld [vmem:[%s182 + $0x7d0] sm:$0xff]
      %v459 = vld [vmem:[%s182 + $0x7d8] sm:$0xff]
      %v460 = vld [vmem:[%s182 + $0x7e0] sm:$0xff]
      %v461 = vld [vmem:[%s182 + $0x7e8] sm:$0xff]
      %v462 = vld [vmem:[%s182 + $0x7f0] sm:$0xff]
      %v463 = vld [vmem:[%s182 + $0x7f8] sm:$0xff]
      %v464 = vld [vmem:[%s182 + $0x800] sm:$0xff]
      %v465 = vld [vmem:[%s182 + $0x808] sm:$0xff]
      %v466 = vld [vmem:[%s182 + $0x810] sm:$0xff]
      %v467 = vld [vmem:[%s182 + $0x818] sm:$0xff]
      %v468 = vld [vmem:[%s182 + $0x820] sm:$0xff]
      %v469 = vld [vmem:[%s182 + $0x828] sm:$0xff]
      %v470 = vld [vmem:[%s182 + $0x830] sm:$0xff]
      %v471 = vld [vmem:[%s182 + $0x838] sm:$0xff]
      %v472 = vld [vmem:[%s182 + $0x840] sm:$0xff]
      %v473 = vld [vmem:[%s182 + $0x848] sm:$0xff]
      %v474 = vld [vmem:[%s182 + $0x850] sm:$0xff]
      %v475 = vld [vmem:[%s182 + $0x858] sm:$0xff]
      %v476 = vld [vmem:[%s182 + $0x860] sm:$0xff]
      %v477 = vld [vmem:[%s182 + $0x868] sm:$0xff]
      %v478 = vld [vmem:[%s182 + $0x870] sm:$0xff]
      %v479 = vld [vmem:[%s182 + $0x878] sm:$0xff]
      %v480 = vld [vmem:[%s182 + $0x880] sm:$0xff]
      %v481 = vld [vmem:[%s182 + $0x888] sm:$0xff]
      %v482 = vld [vmem:[%s182 + $0x890] sm:$0xff]
      %v483 = vld [vmem:[%s182 + $0x898] sm:$0xff]
      %v484 = vld [vmem:[%s182 + $0x8a0] sm:$0xff]
      %v485 = vld [vmem:[%s182 + $0x8a8] sm:$0xff]
      %v486 = vld [vmem:[%s182 + $0x8b0] sm:$0xff]
      %v487 = vld [vmem:[%s182 + $0x8b8] sm:$0xff]
      %v488 = vld [vmem:[%s182 + $0x8c0] sm:$0xff]
      %v489 = vld [vmem:[%s182 + $0x8c8] sm:$0xff]
      %v490 = vld [vmem:[%s182 + $0x8d0] sm:$0xff]
      %v491 = vld [vmem:[%s182 + $0x8d8] sm:$0xff]
      %v492 = vld [vmem:[%s182 + $0x8e0] sm:$0xff]
      %v493 = vld [vmem:[%s182 + $0x8e8] sm:$0xff]
      %v494 = vld [vmem:[%s182 + $0x8f0] sm:$0xff]
      %v495 = vld [vmem:[%s182 + $0x8f8] sm:$0xff]
      %v496 = vld [vmem:[%s182 + $0x900] sm:$0xff]
      %v497 = vld [vmem:[%s182 + $0x908] sm:$0xff]
      %v498 = vld [vmem:[%s182 + $0x910] sm:$0xff]
      %v499 = vld [vmem:[%s182 + $0x918] sm:$0xff]
      %v500 = vld [vmem:[%s182 + $0x920] sm:$0xff]
      %v501 = vld [vmem:[%s182 + $0x928] sm:$0xff]
      %v502 = vld [vmem:[%s182 + $0x930] sm:$0xff]
      %v503 = vld [vmem:[%s182 + $0x938] sm:$0xff]
      %v504 = vld [vmem:[%s182 + $0x940] sm:$0xff]
      %v505 = vld [vmem:[%s182 + $0x948] sm:$0xff]
      %v506 = vld [vmem:[%s182 + $0x950] sm:$0xff]
      %v507 = vld [vmem:[%s182 + $0x958] sm:$0xff]
      %v508 = vld [vmem:[%s182 + $0x960] sm:$0xff]
      %v509 = vld [vmem:[%s182 + $0x968] sm:$0xff]
      %v510 = vld [vmem:[%s182 + $0x970] sm:$0xff]
      %v511 = vld [vmem:[%s182 + $0x978] sm:$0xff]
      %v512 = vld [vmem:[%s182 + $0x980] sm:$0xff]
      %v513 = vld [vmem:[%s182 + $0x988] sm:$0xff]
      %v514 = vld [vmem:[%s182 + $0x990] sm:$0xff]
      %v515 = vld [vmem:[%s182 + $0x998] sm:$0xff]
      %v516 = vld [vmem:[%s182 + $0x9a0] sm:$0xff]
      %v517 = vld [vmem:[%s182 + $0x9a8] sm:$0xff]
      %v518 = vld [vmem:[%s182 + $0x9b0] sm:$0xff]
      %v519 = vld [vmem:[%s182 + $0x9b8] sm:$0xff]
      %v520 = vld [vmem:[%s182 + $0x9c0] sm:$0xff]
      %v521 = vld [vmem:[%s182 + $0x9c8] sm:$0xff]
      %v522 = vld [vmem:[%s182 + $0x9d0] sm:$0xff]
      %v523 = vld [vmem:[%s182 + $0x9d8] sm:$0xff]
      %v524 = vld [vmem:[%s182 + $0x9e0] sm:$0xff]
      %v525 = vld [vmem:[%s182 + $0x9e8] sm:$0xff]
      %v526 = vld [vmem:[%s182 + $0x9f0] sm:$0xff]
      %v527 = vld [vmem:[%s182 + $0x9f8] sm:$0xff]
      %v528 = vld [vmem:[%s182 + $0xa00] sm:$0xff]
      %v529 = vld [vmem:[%s182 + $0xa08] sm:$0xff]
      %v530 = vld [vmem:[%s182 + $0xa10] sm:$0xff]
      %v531 = vld [vmem:[%s182 + $0xa18] sm:$0xff]
      %v532 = vld [vmem:[%s182 + $0xa20] sm:$0xff]
      %v533 = vld [vmem:[%s182 + $0xa28] sm:$0xff]
      %v534 = vld [vmem:[%s182 + $0xa30] sm:$0xff]
      %v535 = vld [vmem:[%s182 + $0xa38] sm:$0xff]
      %v536 = vld [vmem:[%s182 + $0xa40] sm:$0xff]
      %v537 = vld [vmem:[%s182 + $0xa48] sm:$0xff]
      %v538 = vld [vmem:[%s182 + $0xa50] sm:$0xff]
      %v539 = vld [vmem:[%s182 + $0xa58] sm:$0xff]
      %v540 = vld [vmem:[%s182 + $0xa60] sm:$0xff]
      %v541 = vld [vmem:[%s182 + $0xa68] sm:$0xff]
      %v542 = vld [vmem:[%s182 + $0xa70] sm:$0xff]
      %v543 = vld [vmem:[%s182 + $0xa78] sm:$0xff]
      %v544 = vld [vmem:[%s182 + $0xa80] sm:$0xff]
      %v545 = vld [vmem:[%s182 + $0xa88] sm:$0xff]
      %v546 = vld [vmem:[%s182 + $0xa90] sm:$0xff]
      %v547 = vld [vmem:[%s182 + $0xa98] sm:$0xff]
      %v548 = vld [vmem:[%s182 + $0xaa0] sm:$0xff]
      %v549 = vld [vmem:[%s182 + $0xaa8] sm:$0xff]
      %v550 = vld [vmem:[%s182 + $0xab0] sm:$0xff]
      %v551 = vld [vmem:[%s182 + $0xab8] sm:$0xff]
      %v552 = vld [vmem:[%s182 + $0xac0] sm:$0xff]
      %v553 = vld [vmem:[%s182 + $0xac8] sm:$0xff]
      %v554 = vld [vmem:[%s182 + $0xad0] sm:$0xff]
      %v555 = vld [vmem:[%s182 + $0xad8] sm:$0xff]
      %v556 = vld [vmem:[%s182 + $0xae0] sm:$0xff]
      %v557 = vld [vmem:[%s182 + $0xae8] sm:$0xff]
      %v558 = vld [vmem:[%s182 + $0xaf0] sm:$0xff]
      %v559 = vld [vmem:[%s182 + $0xaf8] sm:$0xff]
      %v560 = vld [vmem:[%s182 + $0xb00] sm:$0xff]
      %v561 = vld [vmem:[%s182 + $0xb08] sm:$0xff]
      %v562 = vld [vmem:[%s182 + $0xb10] sm:$0xff]
      %v563 = vld [vmem:[%s182 + $0xb18] sm:$0xff]
      %v564 = vld [vmem:[%s182 + $0xb20] sm:$0xff]
      %v565 = vld [vmem:[%s182 + $0xb28] sm:$0xff]
      %v566 = vld [vmem:[%s182 + $0xb30] sm:$0xff]
      %v567 = vld [vmem:[%s182 + $0xb38] sm:$0xff]
      %v568 = vld [vmem:[%s182 + $0xb40] sm:$0xff]
      %v569 = vld [vmem:[%s182 + $0xb48] sm:$0xff]
      %v570 = vld [vmem:[%s182 + $0xb50] sm:$0xff]
      %v571 = vld [vmem:[%s182 + $0xb58] sm:$0xff]
      %v572 = vld [vmem:[%s182 + $0xb60] sm:$0xff]
      %v573 = vld [vmem:[%s182 + $0xb68] sm:$0xff]
      %v574 = vld [vmem:[%s182 + $0xb70] sm:$0xff]
      %v575 = vld [vmem:[%s182 + $0xb78] sm:$0xff]
      %v576 = vld [vmem:[%s182 + $0xb80] sm:$0xff]
      %v577 = vld [vmem:[%s182 + $0xb88] sm:$0xff]
      %v578 = vld [vmem:[%s182 + $0xb90] sm:$0xff]
      %v579 = vld [vmem:[%s182 + $0xb98] sm:$0xff]
      %v580 = vld [vmem:[%s182 + $0xba0] sm:$0xff]
      %v581 = vld [vmem:[%s182 + $0xba8] sm:$0xff]
      %v582 = vld [vmem:[%s182 + $0xbb0] sm:$0xff]
      %v583 = vld [vmem:[%s182 + $0xbb8] sm:$0xff]
      %v584 = vld [vmem:[%s182 + $0xbc0] sm:$0xff]
      %v585 = vld [vmem:[%s182 + $0xbc8] sm:$0xff]
      %v586 = vld [vmem:[%s182 + $0xbd0] sm:$0xff]
      %v587 = vld [vmem:[%s182 + $0xbd8] sm:$0xff]
      %v588 = vld [vmem:[%s182 + $0xbe0] sm:$0xff]
      %v589 = vld [vmem:[%s182 + $0xbe8] sm:$0xff]
      %v590 = vld [vmem:[%s182 + $0xbf0] sm:$0xff]
      %v591 = vld [vmem:[%s182 + $0xbf8] sm:$0xff]
      %v592 = vld [vmem:[%s182 + $0xc00] sm:$0xff]
      %v593 = vld [vmem:[%s182 + $0xc08] sm:$0xff]
      %v594 = vld [vmem:[%s182 + $0xc10] sm:$0xff]
      %v595 = vld [vmem:[%s182 + $0xc18] sm:$0xff]
      %v596 = vld [vmem:[%s182 + $0xc20] sm:$0xff]
      %v597 = vld [vmem:[%s182 + $0xc28] sm:$0xff]
      %v598 = vld [vmem:[%s182 + $0xc30] sm:$0xff]
      %v599 = vld [vmem:[%s182 + $0xc38] sm:$0xff]
      %v600 = vld [vmem:[%s182 + $0xc40] sm:$0xff]
      %v601 = vld [vmem:[%s182 + $0xc48] sm:$0xff]
      %v602 = vld [vmem:[%s182 + $0xc50] sm:$0xff]
      %v603 = vld [vmem:[%s182 + $0xc58] sm:$0xff]
      %v604 = vld [vmem:[%s182 + $0xc60] sm:$0xff]
      %v605 = vld [vmem:[%s182 + $0xc68] sm:$0xff]
      %v606 = vld [vmem:[%s182 + $0xc70] sm:$0xff]
      %v607 = vld [vmem:[%s182 + $0xc78] sm:$0xff]
      %v608 = vld [vmem:[%s182 + $0xc80] sm:$0xff]
      %v609 = vld [vmem:[%s182 + $0xc88] sm:$0xff]
      %v610 = vld [vmem:[%s182 + $0xc90] sm:$0xff]
      %v611 = vld [vmem:[%s182 + $0xc98] sm:$0xff]
      %v612 = vld [vmem:[%s182 + $0xca0] sm:$0xff]
      %v613 = vld [vmem:[%s182 + $0xca8] sm:$0xff]
      %v614 = vld [vmem:[%s182 + $0xcb0] sm:$0xff]
      %v615 = vld [vmem:[%s182 + $0xcb8] sm:$0xff]
      %v616 = vld [vmem:[%s182 + $0xcc0] sm:$0xff]
      %v617 = vld [vmem:[%s182 + $0xcc8] sm:$0xff]
      %v618 = vld [vmem:[%s182 + $0xcd0] sm:$0xff]
      %v619 = vld [vmem:[%s182 + $0xcd8] sm:$0xff]
      %v620 = vld [vmem:[%s182 + $0xce0] sm:$0xff]
      %v621 = vld [vmem:[%s182 + $0xce8] sm:$0xff]
      %v622 = vld [vmem:[%s182 + $0xcf0] sm:$0xff]
      %v623 = vld [vmem:[%s182 + $0xcf8] sm:$0xff]
      %v624 = vld [vmem:[%s182 + $0xd00] sm:$0xff]
      %v625 = vld [vmem:[%s182 + $0xd08] sm:$0xff]
      %v626 = vld [vmem:[%s182 + $0xd10] sm:$0xff]
      %v627 = vld [vmem:[%s182 + $0xd18] sm:$0xff]
      %v628 = vld [vmem:[%s182 + $0xd20] sm:$0xff]
      %v629 = vld [vmem:[%s182 + $0xd28] sm:$0xff]
      %v630 = vld [vmem:[%s182 + $0xd30] sm:$0xff]
      %v631 = vld [vmem:[%s182 + $0xd38] sm:$0xff]
      %v632 = vld [vmem:[%s182 + $0xd40] sm:$0xff]
      %v633 = vld [vmem:[%s182 + $0xd48] sm:$0xff]
      %v634 = vld [vmem:[%s182 + $0xd50] sm:$0xff]
      %v635 = vld [vmem:[%s182 + $0xd58] sm:$0xff]
      %v636 = vld [vmem:[%s182 + $0xd60] sm:$0xff]
      %v637 = vld [vmem:[%s182 + $0xd68] sm:$0xff]
      %v638 = vld [vmem:[%s182 + $0xd70] sm:$0xff]
      %v639 = vld [vmem:[%s182 + $0xd78] sm:$0xff]
      %v640 = vld [vmem:[%s182 + $0xd80] sm:$0xff]
      %v641 = vld [vmem:[%s182 + $0xd88] sm:$0xff]
      %v642 = vld [vmem:[%s182 + $0xd90] sm:$0xff]
      %v643 = vld [vmem:[%s182 + $0xd98] sm:$0xff]
      %v644 = vld [vmem:[%s182 + $0xda0] sm:$0xff]
      %v645 = vld [vmem:[%s182 + $0xda8] sm:$0xff]
      %v646 = vld [vmem:[%s182 + $0xdb0] sm:$0xff]
      %v647 = vld [vmem:[%s182 + $0xdb8] sm:$0xff]
      %v648 = vld [vmem:[%s182 + $0xdc0] sm:$0xff]
      %v649 = vld [vmem:[%s182 + $0xdc8] sm:$0xff]
      %v650 = vld [vmem:[%s182 + $0xdd0] sm:$0xff]
      %v651 = vld [vmem:[%s182 + $0xdd8] sm:$0xff]
      %v652 = vld [vmem:[%s182 + $0xde0] sm:$0xff]
      %v653 = vld [vmem:[%s182 + $0xde8] sm:$0xff]
      %v654 = vld [vmem:[%s182 + $0xdf0] sm:$0xff]
      %v655 = vld [vmem:[%s182 + $0xdf8] sm:$0xff]
      %v656 = vld [vmem:[%s182 + $0xe00] sm:$0xff]
      %v657 = vld [vmem:[%s182 + $0xe08] sm:$0xff]
      %v658 = vld [vmem:[%s182 + $0xe10] sm:$0xff]
      %v659 = vld [vmem:[%s182 + $0xe18] sm:$0xff]
      %v660 = vld [vmem:[%s182 + $0xe20] sm:$0xff]
      %v661 = vld [vmem:[%s182 + $0xe28] sm:$0xff]
      %v662 = vld [vmem:[%s182 + $0xe30] sm:$0xff]
      %v663 = vld [vmem:[%s182 + $0xe38] sm:$0xff]
      %v664 = vld [vmem:[%s182 + $0xe40] sm:$0xff]
      %v665 = vld [vmem:[%s182 + $0xe48] sm:$0xff]
      %v666 = vld [vmem:[%s182 + $0xe50] sm:$0xff]
      %v667 = vld [vmem:[%s182 + $0xe58] sm:$0xff]
      %v668 = vld [vmem:[%s182 + $0xe60] sm:$0xff]
      %v669 = vld [vmem:[%s182 + $0xe68] sm:$0xff]
      %v670 = vld [vmem:[%s182 + $0xe70] sm:$0xff]
      %v671 = vld [vmem:[%s182 + $0xe78] sm:$0xff]
      %v672 = vld [vmem:[%s182 + $0xe80] sm:$0xff]
      %v673 = vld [vmem:[%s182 + $0xe88] sm:$0xff]
      %v674 = vld [vmem:[%s182 + $0xe90] sm:$0xff]
      %v675 = vld [vmem:[%s182 + $0xe98] sm:$0xff]
      %v676 = vld [vmem:[%s182 + $0xea0] sm:$0xff]
      %v677 = vld [vmem:[%s182 + $0xea8] sm:$0xff]
      %v678 = vld [vmem:[%s182 + $0xeb0] sm:$0xff]
      %v679 = vld [vmem:[%s182 + $0xeb8] sm:$0xff]
      %v680 = vld [vmem:[%s182 + $0xec0] sm:$0xff]
      %v681 = vld [vmem:[%s182 + $0xec8] sm:$0xff]
      %v682 = vld [vmem:[%s182 + $0xed0] sm:$0xff]
      %v683 = vld [vmem:[%s182 + $0xed8] sm:$0xff]
      %v684 = vld [vmem:[%s182 + $0xee0] sm:$0xff]
      %v685 = vld [vmem:[%s182 + $0xee8] sm:$0xff]
      %v686 = vld [vmem:[%s182 + $0xef0] sm:$0xff]
      %v687 = vld [vmem:[%s182 + $0xef8] sm:$0xff]
      %v688 = vld [vmem:[%s182 + $0xf00] sm:$0xff]
      %v689 = vld [vmem:[%s182 + $0xf08] sm:$0xff]
      %v690 = vld [vmem:[%s182 + $0xf10] sm:$0xff]
      %v691 = vld [vmem:[%s182 + $0xf18] sm:$0xff]
      %v692 = vld [vmem:[%s182 + $0xf20] sm:$0xff]
      %v693 = vld [vmem:[%s182 + $0xf28] sm:$0xff]
      %v694 = vld [vmem:[%s182 + $0xf30] sm:$0xff]
      %v695 = vld [vmem:[%s182 + $0xf38] sm:$0xff]
      %v696 = vld [vmem:[%s182 + $0xf40] sm:$0xff]
      %v697 = vld [vmem:[%s182 + $0xf48] sm:$0xff]
      %v698 = vld [vmem:[%s182 + $0xf50] sm:$0xff]
      %v699 = vld [vmem:[%s182 + $0xf58] sm:$0xff]
      %v700 = vld [vmem:[%s182 + $0xf60] sm:$0xff]
      %v701 = vld [vmem:[%s182 + $0xf68] sm:$0xff]
      %v702 = vld [vmem:[%s182 + $0xf70] sm:$0xff]
      %v703 = vld [vmem:[%s182 + $0xf78] sm:$0xff]
      %v704 = vld [vmem:[%s182 + $0xf80] sm:$0xff]
      %v705 = vld [vmem:[%s182 + $0xf88] sm:$0xff]
      %v706 = vld [vmem:[%s182 + $0xf90] sm:$0xff]
      %v707 = vld [vmem:[%s182 + $0xf98] sm:$0xff]
      %v708 = vld [vmem:[%s182 + $0xfa0] sm:$0xff]
      %v709 = vld [vmem:[%s182 + $0xfa8] sm:$0xff]
      %v710 = vld [vmem:[%s182 + $0xfb0] sm:$0xff]
      %v711 = vld [vmem:[%s182 + $0xfb8] sm:$0xff]
      %v712 = vld [vmem:[%s182 + $0xfc0] sm:$0xff]
      %v713 = vld [vmem:[%s182 + $0xfc8] sm:$0xff]
      %v714 = vld [vmem:[%s182 + $0xfd0] sm:$0xff]
      %v715 = vld [vmem:[%s182 + $0xfd8] sm:$0xff]
      %v716 = vld [vmem:[%s182 + $0xfe0] sm:$0xff]
      %v717 = vld [vmem:[%s182 + $0xfe8] sm:$0xff]
      %v718 = vld [vmem:[%s182 + $0xff0] sm:$0xff]
      %v719 = vld [vmem:[%s182 + $0xff8] sm:$0xff]
      %720 = vmatprep.subr.mxu0 %v209
      %721 = vmatpush1.msra.mxu0 %v208
      %722 = vmatprep.subr.mxu0 %v217
      %723 = vmatpush1.msra.mxu0 %v216
      %724 = vmatprep.subr.mxu0 %v225
      %725 = vmatpush1.msra.mxu0 %v224
      %726 = vmatprep.subr.mxu0 %v233
      %727 = vmatpush1.msra.mxu0 %v232
      %728 = vmatprep.subr.mxu0 %v241
      %729 = vmatpush1.msra.mxu0 %v240
      %730 = vmatprep.subr.mxu0 %v249
      %731 = vmatpush1.msra.mxu0 %v248
      %732 = vmatprep.subr.mxu0 %v257
      %733 = vmatpush1.msra.mxu0 %v256
      %734 = vmatprep.subr.mxu0 %v265
      %735 = vmatpush1.msra.mxu0 %v264
      %736 = vmatprep.subr.mxu0 %v273
      %737 = vmatpush1.msra.mxu0 %v272
      %738 = vmatprep.subr.mxu0 %v281
      %739 = vmatpush1.msra.mxu0 %v280
      %740 = vmatprep.subr.mxu0 %v289
      %741 = vmatpush1.msra.mxu0 %v288
      %742 = vmatprep.subr.mxu0 %v297
      %743 = vmatpush1.msra.mxu0 %v296
      %744 = vmatprep.subr.mxu0 %v305
      %745 = vmatpush1.msra.mxu0 %v304
      %746 = vmatprep.subr.mxu0 %v313
      %747 = vmatpush1.msra.mxu0 %v312
      %748 = vmatprep.subr.mxu0 %v321
      %749 = vmatpush1.msra.mxu0 %v320
      %750 = vmatprep.subr.mxu0 %v329
      %751 = vmatpush1.msra.mxu0 %v328
      %752 = vmatprep.subr.mxu0 %v337
      %753 = vmatpush1.msra.mxu0 %v336
      %754 = vmatprep.subr.mxu0 %v345
      %755 = vmatpush1.msra.mxu0 %v344
      %756 = vmatprep.subr.mxu0 %v353
      %757 = vmatpush1.msra.mxu0 %v352
      %758 = vmatprep.subr.mxu0 %v361
      %759 = vmatpush1.msra.mxu0 %v360
      %760 = vmatprep.subr.mxu0 %v369
      %761 = vmatpush1.msra.mxu0 %v368
      %762 = vmatprep.subr.mxu0 %v377
      %763 = vmatpush1.msra.mxu0 %v376
      %764 = vmatprep.subr.mxu0 %v385
      %765 = vmatpush1.msra.mxu0 %v384
      %766 = vmatprep.subr.mxu0 %v393
      %767 = vmatpush1.msra.mxu0 %v392
      %768 = vmatprep.subr.mxu0 %v401
      %769 = vmatpush1.msra.mxu0 %v400
      %770 = vmatprep.subr.mxu0 %v409
      %771 = vmatpush1.msra.mxu0 %v408
      %772 = vmatprep.subr.mxu0 %v417
      %773 = vmatpush1.msra.mxu0 %v416
      %774 = vmatprep.subr.mxu0 %v425
      %775 = vmatpush1.msra.mxu0 %v424
      %776 = vmatprep.subr.mxu0 %v433
      %777 = vmatpush1.msra.mxu0 %v432
      %778 = vmatprep.subr.mxu0 %v441
      %779 = vmatpush1.msra.mxu0 %v440
      %780 = vmatprep.subr.mxu0 %v449
      %781 = vmatpush1.msra.mxu0 %v448
      %782 = vmatprep.subr.mxu0 %v457
      %783 = vmatpush1.msra.mxu0 %v456
      %784 = vmatprep.mubr.f32.mxu0 %v193
      %785 = vmatmul.mubr.f32.gmra.mrb[0].mxu0 %v192
      %v786 = vpop.f32.mrb[0].mxu0
      %v787 = vadd.f32 0.0, %v786
      %v788 = vpop.f32.mrb[0].mxu0
      %v789 = vadd.f32 0.0, %v788
      %790 = vmatprep.mubr.f32.mxu0 %v197
      %791 = vmatmul.mubr.f32.gmra.mrb[0].mxu0 %v196
      %v792 = vpop.f32.mrb[0].mxu0
      %v793 = vadd.f32 0.0, %v792
      %v794 = vpop.f32.mrb[0].mxu0
      %v795 = vadd.f32 0.0, %v794
      %796 = vmatprep.mubr.f32.mxu0 %v201
      %797 = vmatmul.mubr.f32.gmra.mrb[0].mxu0 %v200
      %v798 = vpop.f32.mrb[0].mxu0
      %v799 = vadd.f32 0.0, %v798
      %v800 = vpop.f32.mrb[0].mxu0
      %v801 = vadd.f32 0.0, %v800
      %802 = vmatprep.mubr.f32.mxu0 %v205
      %803 = vmatmul.mubr.f32.gmra.mrb[0].mxu0 %v204
      %v804 = vpop.f32.mrb[0].mxu0
      %v805 = vadd.f32 0.0, %v804
      %v806 = vpop.f32.mrb[0].mxu0
      %v807 = vadd.f32 0.0, %v806
      %808 = vdwg.mxu0
      %809 = vmatprep.subr.mxu0 %v465
      %810 = vmatpush1.msra.mxu0 %v464
      %811 = vmatprep.subr.mxu0 %v473
      %812 = vmatpush1.msra.mxu0 %v472
      %813 = vmatprep.subr.mxu0 %v481
      %814 = vmatpush1.msra.mxu0 %v480
      %815 = vmatprep.subr.mxu0 %v489
      %816 = vmatpush1.msra.mxu0 %v488
      %817 = vmatprep.subr.mxu0 %v497
      %818 = vmatpush1.msra.mxu0 %v496
      %819 = vmatprep.subr.mxu0 %v505
      %820 = vmatpush1.msra.mxu0 %v504
      %821 = vmatprep.subr.mxu0 %v513
      %822 = vmatpush1.msra.mxu0 %v512
      %823 = vmatprep.subr.mxu0 %v521
      %824 = vmatpush1.msra.mxu0 %v520
      %825 = vmatprep.subr.mxu0 %v529
      %826 = vmatpush1.msra.mxu0 %v528
      %827 = vmatprep.subr.mxu0 %v537
      %828 = vmatpush1.msra.mxu0 %v536
      %829 = vmatprep.subr.mxu0 %v545
      %830 = vmatpush1.msra.mxu0 %v544
      %831 = vmatprep.subr.mxu0 %v553
      %832 = vmatpush1.msra.mxu0 %v552
      %833 = vmatprep.subr.mxu0 %v561
      %834 = vmatpush1.msra.mxu0 %v560
      %835 = vmatprep.subr.mxu0 %v569
      %836 = vmatpush1.msra.mxu0 %v568
      %837 = vmatprep.subr.mxu0 %v577
      %838 = vmatpush1.msra.mxu0 %v576
      %839 = vmatprep.subr.mxu0 %v585
      %840 = vmatpush1.msra.mxu0 %v584
      %841 = vmatprep.subr.mxu0 %v593
      %842 = vmatpush1.msra.mxu0 %v592
      %843 = vmatprep.subr.mxu0 %v601
      %844 = vmatpush1.msra.mxu0 %v600
      %845 = vmatprep.subr.mxu0 %v609
      %846 = vmatpush1.msra.mxu0 %v608
      %847 = vmatprep.subr.mxu0 %v617
      %848 = vmatpush1.msra.mxu0 %v616
      %849 = vmatprep.subr.mxu0 %v625
      %850 = vmatpush1.msra.mxu0 %v624
      %851 = vmatprep.subr.mxu0 %v633
      %852 = vmatpush1.msra.mxu0 %v632
      %853 = vmatprep.subr.mxu0 %v641
      %854 = vmatpush1.msra.mxu0 %v640
      %855 = vmatprep.subr.mxu0 %v649
      %856 = vmatpush1.msra.mxu0 %v648
      %857 = vmatprep.subr.mxu0 %v657
      %858 = vmatpush1.msra.mxu0 %v656
      %859 = vmatprep.subr.mxu0 %v665
      %860 = vmatpush1.msra.mxu0 %v664
      %861 = vmatprep.subr.mxu0 %v673
      %862 = vmatpush1.msra.mxu0 %v672
      %863 = vmatprep.subr.mxu0 %v681
      %864 = vmatpush1.msra.mxu0 %v680
      %865 = vmatprep.subr.mxu0 %v689
      %866 = vmatpush1.msra.mxu0 %v688
      %867 = vmatprep.subr.mxu0 %v697
      %868 = vmatpush1.msra.mxu0 %v696
      %869 = vmatprep.subr.mxu0 %v705
      %870 = vmatpush1.msra.mxu0 %v704
      %871 = vmatprep.subr.mxu0 %v713
      %872 = vmatpush1.msra.mxu0 %v712
      %873 = vmatprep.mubr.f32.mxu0 %v195
      %874 = vmatmul.mubr.f32.gmra.mrb[0].mxu0 %v194
      %v875 = vpop.f32.mrb[0].mxu0
      %v876 = vadd.f32 %v787, %v875
      %v877 = vpop.f32.mrb[0].mxu0
      %v878 = vadd.f32 %v789, %v877
      %879 = vmatprep.mubr.f32.mxu0 %v199
      %880 = vmatmul.mubr.f32.gmra.mrb[0].mxu0 %v198
      %v881 = vpop.f32.mrb[0].mxu0
      %v882 = vadd.f32 %v793, %v881
      %v883 = vpop.f32.mrb[0].mxu0
      %v884 = vadd.f32 %v795, %v883
      %885 = vmatprep.mubr.f32.mxu0 %v203
      %886 = vmatmul.mubr.f32.gmra.mrb[0].mxu0 %v202
      %v887 = vpop.f32.mrb[0].mxu0
      %v888 = vadd.f32 %v799, %v887
      %v889 = vpop.f32.mrb[0].mxu0
      %v890 = vadd.f32 %v801, %v889
      %891 = vmatprep.mubr.f32.mxu0 %v207
      %892 = vmatmul.mubr.f32.gmra.mrb[0].mxu0 %v206
      %v893 = vpop.f32.mrb[0].mxu0
      %v894 = vadd.f32 %v805, %v893
      %v895 = vpop.f32.mrb[0].mxu0
      %v896 = vadd.f32 %v807, %v895
      %897 = vdwg.mxu0
      %898 = vmatprep.subr.mxu0 %v211
      %899 = vmatpush1.msra.mxu0 %v210
      %900 = vmatprep.subr.mxu0 %v219
      %901 = vmatpush1.msra.mxu0 %v218
      %902 = vmatprep.subr.mxu0 %v227
      %903 = vmatpush1.msra.mxu0 %v226
      %904 = vmatprep.subr.mxu0 %v235
      %905 = vmatpush1.msra.mxu0 %v234
      %906 = vmatprep.subr.mxu0 %v243
      %907 = vmatpush1.msra.mxu0 %v242
      %908 = vmatprep.subr.mxu0 %v251
      %909 = vmatpush1.msra.mxu0 %v250
      %910 = vmatprep.subr.mxu0 %v259
      %911 = vmatpush1.msra.mxu0 %v258
      %912 = vmatprep.subr.mxu0 %v267
      %913 = vmatpush1.msra.mxu0 %v266
      %914 = vmatprep.subr.mxu0 %v275
      %915 = vmatpush1.msra.mxu0 %v274
      %916 = vmatprep.subr.mxu0 %v283
      %917 = vmatpush1.msra.mxu0 %v282
      %918 = vmatprep.subr.mxu0 %v291
      %919 = vmatpush1.msra.mxu0 %v290
      %920 = vmatprep.subr.mxu0 %v299
      %921 = vmatpush1.msra.mxu0 %v298
      %922 = vmatprep.subr.mxu0 %v307
      %923 = vmatpush1.msra.mxu0 %v306
      %924 = vmatprep.subr.mxu0 %v315
      %925 = vmatpush1.msra.mxu0 %v314
      %926 = vmatprep.subr.mxu0 %v323
      %927 = vmatpush1.msra.mxu0 %v322
      %928 = vmatprep.subr.mxu0 %v331
      %929 = vmatpush1.msra.mxu0 %v330
      %930 = vmatprep.subr.mxu0 %v339
      %931 = vmatpush1.msra.mxu0 %v338
      %932 = vmatprep.subr.mxu0 %v347
      %933 = vmatpush1.msra.mxu0 %v346
      %934 = vmatprep.subr.mxu0 %v355
      %935 = vmatpush1.msra.mxu0 %v354
      %936 = vmatprep.subr.mxu0 %v363
      %937 = vmatpush1.msra.mxu0 %v362
      %938 = vmatprep.subr.mxu0 %v371
      %939 = vmatpush1.msra.mxu0 %v370
      %940 = vmatprep.subr.mxu0 %v379
      %941 = vmatpush1.msra.mxu0 %v378
      %942 = vmatprep.subr.mxu0 %v387
      %943 = vmatpush1.msra.mxu0 %v386
      %944 = vmatprep.subr.mxu0 %v395
      %945 = vmatpush1.msra.mxu0 %v394
      %946 = vmatprep.subr.mxu0 %v403
      %947 = vmatpush1.msra.mxu0 %v402
      %948 = vmatprep.subr.mxu0 %v411
      %949 = vmatpush1.msra.mxu0 %v410
      %950 = vmatprep.subr.mxu0 %v419
      %951 = vmatpush1.msra.mxu0 %v418
      %952 = vmatprep.subr.mxu0 %v427
      %953 = vmatpush1.msra.mxu0 %v426
      %954 = vmatprep.subr.mxu0 %v435
      %955 = vmatpush1.msra.mxu0 %v434
      %956 = vmatprep.subr.mxu0 %v443
      %957 = vmatpush1.msra.mxu0 %v442
      %958 = vmatprep.subr.mxu0 %v451
      %959 = vmatpush1.msra.mxu0 %v450
      %960 = vmatprep.subr.mxu0 %v459
      %961 = vmatpush1.msra.mxu0 %v458
      %962 = vmatprep.mubr.f32.mxu0 %v193
      %963 = vmatmul.mubr.f32.gmra.mrb[0].mxu0 %v192
      %v964 = vpop.f32.mrb[0].mxu0
      %v965 = vadd.f32 0.0, %v964
      %v966 = vpop.f32.mrb[0].mxu0
      %v967 = vadd.f32 0.0, %v966
      %968 = vmatprep.mubr.f32.mxu0 %v197
      %969 = vmatmul.mubr.f32.gmra.mrb[0].mxu0 %v196
      %v970 = vpop.f32.mrb[0].mxu0
      %v971 = vadd.f32 0.0, %v970
      %v972 = vpop.f32.mrb[0].mxu0
      %v973 = vadd.f32 0.0, %v972
      %974 = vmatprep.mubr.f32.mxu0 %v201
      %975 = vmatmul.mubr.f32.gmra.mrb[0].mxu0 %v200
      %v976 = vpop.f32.mrb[0].mxu0
      %v977 = vadd.f32 0.0, %v976
      %v978 = vpop.f32.mrb[0].mxu0
      %v979 = vadd.f32 0.0, %v978
      %980 = vmatprep.mubr.f32.mxu0 %v205
      %981 = vmatmul.mubr.f32.gmra.mrb[0].mxu0 %v204
      %v982 = vpop.f32.mrb[0].mxu0
      %v983 = vadd.f32 0.0, %v982
      %v984 = vpop.f32.mrb[0].mxu0
      %v985 = vadd.f32 0.0, %v984
      %986 = vdwg.mxu0
      %987 = vmatprep.subr.mxu0 %v467
      %988 = vmatpush1.msra.mxu0 %v466
      %989 = vmatprep.subr.mxu0 %v475
      %990 = vmatpush1.msra.mxu0 %v474
      %991 = vmatprep.subr.mxu0 %v483
      %992 = vmatpush1.msra.mxu0 %v482
      %993 = vmatprep.subr.mxu0 %v491
      %994 = vmatpush1.msra.mxu0 %v490
      %995 = vmatprep.subr.mxu0 %v499
      %996 = vmatpush1.msra.mxu0 %v498
      %997 = vmatprep.subr.mxu0 %v507
      %998 = vmatpush1.msra.mxu0 %v506
      %999 = vmatprep.subr.mxu0 %v515
      %1000 = vmatpush1.msra.mxu0 %v514
      %1001 = vmatprep.subr.mxu0 %v523
      %1002 = vmatpush1.msra.mxu0 %v522
      %1003 = vmatprep.subr.mxu0 %v531
      %1004 = vmatpush1.msra.mxu0 %v530
      %1005 = vmatprep.subr.mxu0 %v539
      %1006 = vmatpush1.msra.mxu0 %v538
      %1007 = vmatprep.subr.mxu0 %v547
      %1008 = vmatpush1.msra.mxu0 %v546
      %1009 = vmatprep.subr.mxu0 %v555
      %1010 = vmatpush1.msra.mxu0 %v554
      %1011 = vmatprep.subr.mxu0 %v563
      %1012 = vmatpush1.msra.mxu0 %v562
      %1013 = vmatprep.subr.mxu0 %v571
      %1014 = vmatpush1.msra.mxu0 %v570
      %1015 = vmatprep.subr.mxu0 %v579
      %1016 = vmatpush1.msra.mxu0 %v578
      %1017 = vmatprep.subr.mxu0 %v587
      %1018 = vmatpush1.msra.mxu0 %v586
      %1019 = vmatprep.subr.mxu0 %v595
      %1020 = vmatpush1.msra.mxu0 %v594
      %1021 = vmatprep.subr.mxu0 %v603
      %1022 = vmatpush1.msra.mxu0 %v602
      %1023 = vmatprep.subr.mxu0 %v611
      %1024 = vmatpush1.msra.mxu0 %v610
      %1025 = vmatprep.subr.mxu0 %v619
      %1026 = vmatpush1.msra.mxu0 %v618
      %1027 = vmatprep.subr.mxu0 %v627
      %1028 = vmatpush1.msra.mxu0 %v626
      %1029 = vmatprep.subr.mxu0 %v635
      %1030 = vmatpush1.msra.mxu0 %v634
      %1031 = vmatprep.subr.mxu0 %v643
      %1032 = vmatpush1.msra.mxu0 %v642
      %1033 = vmatprep.subr.mxu0 %v651
      %1034 = vmatpush1.msra.mxu0 %v650
      %1035 = vmatprep.subr.mxu0 %v659
      %1036 = vmatpush1.msra.mxu0 %v658
      %1037 = vmatprep.subr.mxu0 %v667
      %1038 = vmatpush1.msra.mxu0 %v666
      %1039 = vmatprep.subr.mxu0 %v675
      %1040 = vmatpush1.msra.mxu0 %v674
      %1041 = vmatprep.subr.mxu0 %v683
      %1042 = vmatpush1.msra.mxu0 %v682
      %1043 = vmatprep.subr.mxu0 %v691
      %1044 = vmatpush1.msra.mxu0 %v690
      %1045 = vmatprep.subr.mxu0 %v699
      %1046 = vmatpush1.msra.mxu0 %v698
      %1047 = vmatprep.subr.mxu0 %v707
      %1048 = vmatpush1.msra.mxu0 %v706
      %1049 = vmatprep.subr.mxu0 %v715
      %1050 = vmatpush1.msra.mxu0 %v714
      %1051 = vmatprep.mubr.f32.mxu0 %v195
      %1052 = vmatmul.mubr.f32.gmra.mrb[0].mxu0 %v194
      %v1053 = vpop.f32.mrb[0].mxu0
      %v1054 = vadd.f32 %v965, %v1053
      %v1055 = vpop.f32.mrb[0].mxu0
      %v1056 = vadd.f32 %v967, %v1055
      %1057 = vmatprep.mubr.f32.mxu0 %v199
      %1058 = vmatmul.mubr.f32.gmra.mrb[0].mxu0 %v198
      %v1059 = vpop.f32.mrb[0].mxu0
      %v1060 = vadd.f32 %v971, %v1059
      %v1061 = vpop.f32.mrb[0].mxu0
      %v1062 = vadd.f32 %v973, %v1061
      %1063 = vmatprep.mubr.f32.mxu0 %v203
      %1064 = vmatmul.mubr.f32.gmra.mrb[0].mxu0 %v202
      %v1065 = vpop.f32.mrb[0].mxu0
      %v1066 = vadd.f32 %v977, %v1065
      %v1067 = vpop.f32.mrb[0].mxu0
      %v1068 = vadd.f32 %v979, %v1067
      %1069 = vmatprep.mubr.f32.mxu0 %v207
      %1070 = vmatmul.mubr.f32.gmra.mrb[0].mxu0 %v206
      %v1071 = vpop.f32.mrb[0].mxu0
      %v1072 = vadd.f32 %v983, %v1071
      %v1073 = vpop.f32.mrb[0].mxu0
      %v1074 = vadd.f32 %v985, %v1073
      %1075 = vdwg.mxu0
      %1076 = vmatprep.subr.mxu0 %v213
      %1077 = vmatpush1.msra.mxu0 %v212
      %1078 = vmatprep.subr.mxu0 %v221
      %1079 = vmatpush1.msra.mxu0 %v220
      %1080 = vmatprep.subr.mxu0 %v229
      %1081 = vmatpush1.msra.mxu0 %v228
      %1082 = vmatprep.subr.mxu0 %v237
      %1083 = vmatpush1.msra.mxu0 %v236
      %1084 = vmatprep.subr.mxu0 %v245
      %1085 = vmatpush1.msra.mxu0 %v244
      %1086 = vmatprep.subr.mxu0 %v253
      %1087 = vmatpush1.msra.mxu0 %v252
      %1088 = vmatprep.subr.mxu0 %v261
      %1089 = vmatpush1.msra.mxu0 %v260
      %1090 = vmatprep.subr.mxu0 %v269
      %1091 = vmatpush1.msra.mxu0 %v268
      %1092 = vmatprep.subr.mxu0 %v277
      %1093 = vmatpush1.msra.mxu0 %v276
      %1094 = vmatprep.subr.mxu0 %v285
      %1095 = vmatpush1.msra.mxu0 %v284
      %1096 = vmatprep.subr.mxu0 %v293
      %1097 = vmatpush1.msra.mxu0 %v292
      %1098 = vmatprep.subr.mxu0 %v301
      %1099 = vmatpush1.msra.mxu0 %v300
      %1100 = vmatprep.subr.mxu0 %v309
      %1101 = vmatpush1.msra.mxu0 %v308
      %1102 = vmatprep.subr.mxu0 %v317
      %1103 = vmatpush1.msra.mxu0 %v316
      %1104 = vmatprep.subr.mxu0 %v325
      %1105 = vmatpush1.msra.mxu0 %v324
      %1106 = vmatprep.subr.mxu0 %v333
      %1107 = vmatpush1.msra.mxu0 %v332
      %1108 = vmatprep.subr.mxu0 %v341
      %1109 = vmatpush1.msra.mxu0 %v340
      %1110 = vmatprep.subr.mxu0 %v349
      %1111 = vmatpush1.msra.mxu0 %v348
      %1112 = vmatprep.subr.mxu0 %v357
      %1113 = vmatpush1.msra.mxu0 %v356
      %1114 = vmatprep.subr.mxu0 %v365
      %1115 = vmatpush1.msra.mxu0 %v364
      %1116 = vmatprep.subr.mxu0 %v373
      %1117 = vmatpush1.msra.mxu0 %v372
      %1118 = vmatprep.subr.mxu0 %v381
      %1119 = vmatpush1.msra.mxu0 %v380
      %1120 = vmatprep.subr.mxu0 %v389
      %1121 = vmatpush1.msra.mxu0 %v388
      %1122 = vmatprep.subr.mxu0 %v397
      %1123 = vmatpush1.msra.mxu0 %v396
      %1124 = vmatprep.subr.mxu0 %v405
      %1125 = vmatpush1.msra.mxu0 %v404
      %1126 = vmatprep.subr.mxu0 %v413
      %1127 = vmatpush1.msra.mxu0 %v412
      %1128 = vmatprep.subr.mxu0 %v421
      %1129 = vmatpush1.msra.mxu0 %v420
      %1130 = vmatprep.subr.mxu0 %v429
      %1131 = vmatpush1.msra.mxu0 %v428
      %1132 = vmatprep.subr.mxu0 %v437
      %1133 = vmatpush1.msra.mxu0 %v436
      %1134 = vmatprep.subr.mxu0 %v445
      %1135 = vmatpush1.msra.mxu0 %v444
      %1136 = vmatprep.subr.mxu0 %v453
      %1137 = vmatpush1.msra.mxu0 %v452
      %1138 = vmatprep.subr.mxu0 %v461
      %1139 = vmatpush1.msra.mxu0 %v460
      %1140 = vmatprep.mubr.f32.mxu0 %v193
      %1141 = vmatmul.mubr.f32.gmra.mrb[0].mxu0 %v192
      %v1142 = vpop.f32.mrb[0].mxu0
      %v1143 = vadd.f32 0.0, %v1142
      %v1144 = vpop.f32.mrb[0].mxu0
      %v1145 = vadd.f32 0.0, %v1144
      %1146 = vmatprep.mubr.f32.mxu0 %v197
      %1147 = vmatmul.mubr.f32.gmra.mrb[0].mxu0 %v196
      %v1148 = vpop.f32.mrb[0].mxu0
      %v1149 = vadd.f32 0.0, %v1148
      %v1150 = vpop.f32.mrb[0].mxu0
      %v1151 = vadd.f32 0.0, %v1150
      %1152 = vmatprep.mubr.f32.mxu0 %v201
      %1153 = vmatmul.mubr.f32.gmra.mrb[0].mxu0 %v200
      %v1154 = vpop.f32.mrb[0].mxu0
      %v1155 = vadd.f32 0.0, %v1154
      %v1156 = vpop.f32.mrb[0].mxu0
      %v1157 = vadd.f32 0.0, %v1156
      %1158 = vmatprep.mubr.f32.mxu0 %v205
      %1159 = vmatmul.mubr.f32.gmra.mrb[0].mxu0 %v204
      %v1160 = vpop.f32.mrb[0].mxu0
      %v1161 = vadd.f32 0.0, %v1160
      %v1162 = vpop.f32.mrb[0].mxu0
      %v1163 = vadd.f32 0.0, %v1162
      %1164 = vdwg.mxu0
      %1165 = vmatprep.subr.mxu0 %v469
      %1166 = vmatpush1.msra.mxu0 %v468
      %1167 = vmatprep.subr.mxu0 %v477
      %1168 = vmatpush1.msra.mxu0 %v476
      %1169 = vmatprep.subr.mxu0 %v485
      %1170 = vmatpush1.msra.mxu0 %v484
      %1171 = vmatprep.subr.mxu0 %v493
      %1172 = vmatpush1.msra.mxu0 %v492
      %1173 = vmatprep.subr.mxu0 %v501
      %1174 = vmatpush1.msra.mxu0 %v500
      %1175 = vmatprep.subr.mxu0 %v509
      %1176 = vmatpush1.msra.mxu0 %v508
      %1177 = vmatprep.subr.mxu0 %v517
      %1178 = vmatpush1.msra.mxu0 %v516
      %1179 = vmatprep.subr.mxu0 %v525
      %1180 = vmatpush1.msra.mxu0 %v524
      %1181 = vmatprep.subr.mxu0 %v533
      %1182 = vmatpush1.msra.mxu0 %v532
      %1183 = vmatprep.subr.mxu0 %v541
      %1184 = vmatpush1.msra.mxu0 %v540
      %1185 = vmatprep.subr.mxu0 %v549
      %1186 = vmatpush1.msra.mxu0 %v548
      %1187 = vmatprep.subr.mxu0 %v557
      %1188 = vmatpush1.msra.mxu0 %v556
      %1189 = vmatprep.subr.mxu0 %v565
      %1190 = vmatpush1.msra.mxu0 %v564
      %1191 = vmatprep.subr.mxu0 %v573
      %1192 = vmatpush1.msra.mxu0 %v572
      %1193 = vmatprep.subr.mxu0 %v581
      %1194 = vmatpush1.msra.mxu0 %v580
      %1195 = vmatprep.subr.mxu0 %v589
      %1196 = vmatpush1.msra.mxu0 %v588
      %1197 = vmatprep.subr.mxu0 %v597
      %1198 = vmatpush1.msra.mxu0 %v596
      %1199 = vmatprep.subr.mxu0 %v605
      %1200 = vmatpush1.msra.mxu0 %v604
      %1201 = vmatprep.subr.mxu0 %v613
      %1202 = vmatpush1.msra.mxu0 %v612
      %1203 = vmatprep.subr.mxu0 %v621
      %1204 = vmatpush1.msra.mxu0 %v620
      %1205 = vmatprep.subr.mxu0 %v629
      %1206 = vmatpush1.msra.mxu0 %v628
      %1207 = vmatprep.subr.mxu0 %v637
      %1208 = vmatpush1.msra.mxu0 %v636
      %1209 = vmatprep.subr.mxu0 %v645
      %1210 = vmatpush1.msra.mxu0 %v644
      %1211 = vmatprep.subr.mxu0 %v653
      %1212 = vmatpush1.msra.mxu0 %v652
      %1213 = vmatprep.subr.mxu0 %v661
      %1214 = vmatpush1.msra.mxu0 %v660
      %1215 = vmatprep.subr.mxu0 %v669
      %1216 = vmatpush1.msra.mxu0 %v668
      %1217 = vmatprep.subr.mxu0 %v677
      %1218 = vmatpush1.msra.mxu0 %v676
      %1219 = vmatprep.subr.mxu0 %v685
      %1220 = vmatpush1.msra.mxu0 %v684
      %1221 = vmatprep.subr.mxu0 %v693
      %1222 = vmatpush1.msra.mxu0 %v692
      %1223 = vmatprep.subr.mxu0 %v701
      %1224 = vmatpush1.msra.mxu0 %v700
      %1225 = vmatprep.subr.mxu0 %v709
      %1226 = vmatpush1.msra.mxu0 %v708
      %1227 = vmatprep.subr.mxu0 %v717
      %1228 = vmatpush1.msra.mxu0 %v716
      %1229 = vmatprep.mubr.f32.mxu0 %v195
      %1230 = vmatmul.mubr.f32.gmra.mrb[0].mxu0 %v194
      %v1231 = vpop.f32.mrb[0].mxu0
      %v1232 = vadd.f32 %v1143, %v1231
      %v1233 = vpop.f32.mrb[0].mxu0
      %v1234 = vadd.f32 %v1145, %v1233
      %1235 = vmatprep.mubr.f32.mxu0 %v199
      %1236 = vmatmul.mubr.f32.gmra.mrb[0].mxu0 %v198
      %v1237 = vpop.f32.mrb[0].mxu0
      %v1238 = vadd.f32 %v1149, %v1237
      %v1239 = vpop.f32.mrb[0].mxu0
      %v1240 = vadd.f32 %v1151, %v1239
      %1241 = vmatprep.mubr.f32.mxu0 %v203
      %1242 = vmatmul.mubr.f32.gmra.mrb[0].mxu0 %v202
      %v1243 = vpop.f32.mrb[0].mxu0
      %v1244 = vadd.f32 %v1155, %v1243
      %v1245 = vpop.f32.mrb[0].mxu0
      %v1246 = vadd.f32 %v1157, %v1245
      %1247 = vmatprep.mubr.f32.mxu0 %v207
      %1248 = vmatmul.mubr.f32.gmra.mrb[0].mxu0 %v206
      %v1249 = vpop.f32.mrb[0].mxu0
      %v1250 = vadd.f32 %v1161, %v1249
      %v1251 = vpop.f32.mrb[0].mxu0
      %v1252 = vadd.f32 %v1163, %v1251
      %1253 = vdwg.mxu0
      %1254 = vmatprep.subr.mxu0 %v215
      %1255 = vmatpush1.msra.mxu0 %v214
      %1256 = vmatprep.subr.mxu0 %v223
      %1257 = vmatpush1.msra.mxu0 %v222
      %1258 = vmatprep.subr.mxu0 %v231
      %1259 = vmatpush1.msra.mxu0 %v230
      %1260 = vmatprep.subr.mxu0 %v239
      %1261 = vmatpush1.msra.mxu0 %v238
      %1262 = vmatprep.subr.mxu0 %v247
      %1263 = vmatpush1.msra.mxu0 %v246
      %1264 = vmatprep.subr.mxu0 %v255
      %1265 = vmatpush1.msra.mxu0 %v254
      %1266 = vmatprep.subr.mxu0 %v263
      %1267 = vmatpush1.msra.mxu0 %v262
      %1268 = vmatprep.subr.mxu0 %v271
      %1269 = vmatpush1.msra.mxu0 %v270
      %1270 = vmatprep.subr.mxu0 %v279
      %1271 = vmatpush1.msra.mxu0 %v278
      %1272 = vmatprep.subr.mxu0 %v287
      %1273 = vmatpush1.msra.mxu0 %v286
      %1274 = vmatprep.subr.mxu0 %v295
      %1275 = vmatpush1.msra.mxu0 %v294
      %1276 = vmatprep.subr.mxu0 %v303
      %1277 = vmatpush1.msra.mxu0 %v302
      %1278 = vmatprep.subr.mxu0 %v311
      %1279 = vmatpush1.msra.mxu0 %v310
      %1280 = vmatprep.subr.mxu0 %v319
      %1281 = vmatpush1.msra.mxu0 %v318
      %1282 = vmatprep.subr.mxu0 %v327
      %1283 = vmatpush1.msra.mxu0 %v326
      %1284 = vmatprep.subr.mxu0 %v335
      %1285 = vmatpush1.msra.mxu0 %v334
      %1286 = vmatprep.subr.mxu0 %v343
      %1287 = vmatpush1.msra.mxu0 %v342
      %1288 = vmatprep.subr.mxu0 %v351
      %1289 = vmatpush1.msra.mxu0 %v350
      %1290 = vmatprep.subr.mxu0 %v359
      %1291 = vmatpush1.msra.mxu0 %v358
      %1292 = vmatprep.subr.mxu0 %v367
      %1293 = vmatpush1.msra.mxu0 %v366
      %1294 = vmatprep.subr.mxu0 %v375
      %1295 = vmatpush1.msra.mxu0 %v374
      %1296 = vmatprep.subr.mxu0 %v383
      %1297 = vmatpush1.msra.mxu0 %v382
      %1298 = vmatprep.subr.mxu0 %v391
      %1299 = vmatpush1.msra.mxu0 %v390
      %1300 = vmatprep.subr.mxu0 %v399
      %1301 = vmatpush1.msra.mxu0 %v398
      %1302 = vmatprep.subr.mxu0 %v407
      %1303 = vmatpush1.msra.mxu0 %v406
      %1304 = vmatprep.subr.mxu0 %v415
      %1305 = vmatpush1.msra.mxu0 %v414
      %1306 = vmatprep.subr.mxu0 %v423
      %1307 = vmatpush1.msra.mxu0 %v422
      %1308 = vmatprep.subr.mxu0 %v431
      %1309 = vmatpush1.msra.mxu0 %v430
      %1310 = vmatprep.subr.mxu0 %v439
      %1311 = vmatpush1.msra.mxu0 %v438
      %1312 = vmatprep.subr.mxu0 %v447
      %1313 = vmatpush1.msra.mxu0 %v446
      %1314 = vmatprep.subr.mxu0 %v455
      %1315 = vmatpush1.msra.mxu0 %v454
      %1316 = vmatprep.subr.mxu0 %v463
      %1317 = vmatpush1.msra.mxu0 %v462
      %1318 = vmatprep.mubr.f32.mxu0 %v193
      %1319 = vmatmul.mubr.f32.gmra.mrb[0].mxu0 %v192
      %v1320 = vpop.f32.mrb[0].mxu0
      %v1321 = vadd.f32 0.0, %v1320
      %v1322 = vpop.f32.mrb[0].mxu0
      %v1323 = vadd.f32 0.0, %v1322
      %1324 = vmatprep.mubr.f32.mxu0 %v197
      %1325 = vmatmul.mubr.f32.gmra.mrb[0].mxu0 %v196
      %v1326 = vpop.f32.mrb[0].mxu0
      %v1327 = vadd.f32 0.0, %v1326
      %v1328 = vpop.f32.mrb[0].mxu0
      %v1329 = vadd.f32 0.0, %v1328
      %1330 = vmatprep.mubr.f32.mxu0 %v201
      %1331 = vmatmul.mubr.f32.gmra.mrb[0].mxu0 %v200
      %v1332 = vpop.f32.mrb[0].mxu0
      %v1333 = vadd.f32 0.0, %v1332
      %v1334 = vpop.f32.mrb[0].mxu0
      %v1335 = vadd.f32 0.0, %v1334
      %1336 = vmatprep.mubr.f32.mxu0 %v205
      %1337 = vmatmul.mubr.f32.gmra.mrb[0].mxu0 %v204
      %v1338 = vpop.f32.mrb[0].mxu0
      %v1339 = vadd.f32 0.0, %v1338
      %v1340 = vpop.f32.mrb[0].mxu0
      %v1341 = vadd.f32 0.0, %v1340
      %1342 = vdwg.mxu0
      %1343 = vmatprep.subr.mxu0 %v471
      %1344 = vmatpush1.msra.mxu0 %v470
      %1345 = vmatprep.subr.mxu0 %v479
      %1346 = vmatpush1.msra.mxu0 %v478
      %1347 = vmatprep.subr.mxu0 %v487
      %1348 = vmatpush1.msra.mxu0 %v486
      %1349 = vmatprep.subr.mxu0 %v495
      %1350 = vmatpush1.msra.mxu0 %v494
      %1351 = vmatprep.subr.mxu0 %v503
      %1352 = vmatpush1.msra.mxu0 %v502
      %1353 = vmatprep.subr.mxu0 %v511
      %1354 = vmatpush1.msra.mxu0 %v510
      %1355 = vmatprep.subr.mxu0 %v519
      %1356 = vmatpush1.msra.mxu0 %v518
      %1357 = vmatprep.subr.mxu0 %v527
      %1358 = vmatpush1.msra.mxu0 %v526
      %1359 = vmatprep.subr.mxu0 %v535
      %1360 = vmatpush1.msra.mxu0 %v534
      %1361 = vmatprep.subr.mxu0 %v543
      %1362 = vmatpush1.msra.mxu0 %v542
      %1363 = vmatprep.subr.mxu0 %v551
      %1364 = vmatpush1.msra.mxu0 %v550
      %1365 = vmatprep.subr.mxu0 %v559
      %1366 = vmatpush1.msra.mxu0 %v558
      %1367 = vmatprep.subr.mxu0 %v567
      %1368 = vmatpush1.msra.mxu0 %v566
      %1369 = vmatprep.subr.mxu0 %v575
      %1370 = vmatpush1.msra.mxu0 %v574
      %1371 = vmatprep.subr.mxu0 %v583
      %1372 = vmatpush1.msra.mxu0 %v582
      %1373 = vmatprep.subr.mxu0 %v591
      %1374 = vmatpush1.msra.mxu0 %v590
      %1375 = vmatprep.subr.mxu0 %v599
      %1376 = vmatpush1.msra.mxu0 %v598
      %1377 = vmatprep.subr.mxu0 %v607
      %1378 = vmatpush1.msra.mxu0 %v606
      %1379 = vmatprep.subr.mxu0 %v615
      %1380 = vmatpush1.msra.mxu0 %v614
      %1381 = vmatprep.subr.mxu0 %v623
      %1382 = vmatpush1.msra.mxu0 %v622
      %1383 = vmatprep.subr.mxu0 %v631
      %1384 = vmatpush1.msra.mxu0 %v630
      %1385 = vmatprep.subr.mxu0 %v639
      %1386 = vmatpush1.msra.mxu0 %v638
      %1387 = vmatprep.subr.mxu0 %v647
      %1388 = vmatpush1.msra.mxu0 %v646
      %1389 = vmatprep.subr.mxu0 %v655
      %1390 = vmatpush1.msra.mxu0 %v654
      %1391 = vmatprep.subr.mxu0 %v663
      %1392 = vmatpush1.msra.mxu0 %v662
      %1393 = vmatprep.subr.mxu0 %v671
      %1394 = vmatpush1.msra.mxu0 %v670
      %1395 = vmatprep.subr.mxu0 %v679
      %1396 = vmatpush1.msra.mxu0 %v678
      %1397 = vmatprep.subr.mxu0 %v687
      %1398 = vmatpush1.msra.mxu0 %v686
      %1399 = vmatprep.subr.mxu0 %v695
      %1400 = vmatpush1.msra.mxu0 %v694
      %1401 = vmatprep.subr.mxu0 %v703
      %1402 = vmatpush1.msra.mxu0 %v702
      %1403 = vmatprep.subr.mxu0 %v711
      %1404 = vmatpush1.msra.mxu0 %v710
      %1405 = vmatprep.subr.mxu0 %v719
      %1406 = vmatpush1.msra.mxu0 %v718
      %1407 = vmatprep.mubr.f32.mxu0 %v195
      %1408 = vmatmul.mubr.f32.gmra.mrb[0].mxu0 %v194
      %v1409 = vpop.f32.mrb[0].mxu0
      %v1410 = vadd.f32 %v1321, %v1409
      %v1411 = vpop.f32.mrb[0].mxu0
      %v1412 = vadd.f32 %v1323, %v1411
      %1413 = vmatprep.mubr.f32.mxu0 %v199
      %1414 = vmatmul.mubr.f32.gmra.mrb[0].mxu0 %v198
      %v1415 = vpop.f32.mrb[0].mxu0
      %v1416 = vadd.f32 %v1327, %v1415
      %v1417 = vpop.f32.mrb[0].mxu0
      %v1418 = vadd.f32 %v1329, %v1417
      %1419 = vmatprep.mubr.f32.mxu0 %v203
      %1420 = vmatmul.mubr.f32.gmra.mrb[0].mxu0 %v202
      %v1421 = vpop.f32.mrb[0].mxu0
      %v1422 = vadd.f32 %v1333, %v1421
      %v1423 = vpop.f32.mrb[0].mxu0
      %v1424 = vadd.f32 %v1335, %v1423
      %1425 = vmatprep.mubr.f32.mxu0 %v207
      %1426 = vmatmul.mubr.f32.gmra.mrb[0].mxu0 %v206
      %v1427 = vpop.f32.mrb[0].mxu0
      %v1428 = vadd.f32 %v1339, %v1427
      %v1429 = vpop.f32.mrb[0].mxu0
      %v1430 = vadd.f32 %v1341, %v1429
      %1431 = vdwg.mxu0
      %v1432 = vmul.f32 %v876, %v876
      %v1433 = vmul.f32 %v878, %v878
      %v1434 = vmul.f32 %v1054, %v1054
      %v1435 = vmul.f32 %v1056, %v1056
      %v1436 = vmul.f32 %v882, %v882
      %v1437 = vmul.f32 %v884, %v884
      %v1438 = vmul.f32 %v1060, %v1060
      %v1439 = vmul.f32 %v1062, %v1062
      %v1440 = vmul.f32 %v888, %v888
      %v1441 = vmul.f32 %v890, %v890
      %v1442 = vmul.f32 %v1066, %v1066
      %v1443 = vmul.f32 %v1068, %v1068
      %v1444 = vmul.f32 %v894, %v894
      %v1445 = vmul.f32 %v896, %v896
      %v1446 = vmul.f32 %v1072, %v1072
      %v1447 = vmul.f32 %v1074, %v1074
      %v1448 = vmul.f32 %v1232, %v1232
      %v1449 = vmul.f32 %v1234, %v1234
      %v1450 = vmul.f32 %v1410, %v1410
      %v1451 = vmul.f32 %v1412, %v1412
      %v1452 = vmul.f32 %v1238, %v1238
      %v1453 = vmul.f32 %v1240, %v1240
      %v1454 = vmul.f32 %v1416, %v1416
      %v1455 = vmul.f32 %v1418, %v1418
      %v1456 = vmul.f32 %v1244, %v1244
      %v1457 = vmul.f32 %v1246, %v1246
      %v1458 = vmul.f32 %v1422, %v1422
      %v1459 = vmul.f32 %v1424, %v1424
      %v1460 = vmul.f32 %v1250, %v1250
      %v1461 = vmul.f32 %v1252, %v1252
      %v1462 = vmul.f32 %v1428, %v1428
      %v1463 = vmul.f32 %v1430, %v1430
      %v1464 = vadd.f32 %v1432, %v1448
      %v1465 = vadd.f32 %v1433, %v1449
      %v1466 = vadd.f32 %v1434, %v1450
      %v1467 = vadd.f32 %v1435, %v1451
      %v1468 = vadd.f32 %v1436, %v1452
      %v1469 = vadd.f32 %v1437, %v1453
      %v1470 = vadd.f32 %v1438, %v1454
      %v1471 = vadd.f32 %v1439, %v1455
      %v1472 = vadd.f32 %v1440, %v1456
      %v1473 = vadd.f32 %v1441, %v1457
      %v1474 = vadd.f32 %v1442, %v1458
      %v1475 = vadd.f32 %v1443, %v1459
      %v1476 = vadd.f32 %v1444, %v1460
      %v1477 = vadd.f32 %v1445, %v1461
      %v1478 = vadd.f32 %v1446, %v1462
      %v1479 = vadd.f32 %v1447, %v1463
      %p1480 = scmp.eq.s32.totalorder %s191, 1
      %v1481 = vrsqrt.pop %v1464
      %v1482 = vmul.f32 %v1464, %v1481
      %vm1483 = vcmp.eq.f32.partialorder %v1464, inf
      %v1484 = vsel %vm1483, %v1464, %v1482
      %vm1485 = vcmp.eq.f32.partialorder %v1464, 0.0
      %v1486 = vand.u32 %v1464, 2147483648
      %v1487 = vsel %vm1485, %v1486, %v1484
      %v1488 = vrsqrt.pop %v1465
      %v1489 = vmul.f32 %v1465, %v1488
      %vm1490 = vcmp.eq.f32.partialorder %v1465, inf
      %v1491 = vsel %vm1490, %v1465, %v1489
      %vm1492 = vcmp.eq.f32.partialorder %v1465, 0.0
      %v1493 = vand.u32 %v1465, 2147483648
      %v1494 = vsel %vm1492, %v1493, %v1491
      %v1495 = vrsqrt.pop %v1466
      %v1496 = vmul.f32 %v1466, %v1495
      %vm1497 = vcmp.eq.f32.partialorder %v1466, inf
      %v1498 = vsel %vm1497, %v1466, %v1496
      %vm1499 = vcmp.eq.f32.partialorder %v1466, 0.0
      %v1500 = vand.u32 %v1466, 2147483648
      %v1501 = vsel %vm1499, %v1500, %v1498
      %v1502 = vrsqrt.pop %v1467
      %v1503 = vmul.f32 %v1467, %v1502
      %vm1504 = vcmp.eq.f32.partialorder %v1467, inf
      %v1505 = vsel %vm1504, %v1467, %v1503
      %vm1506 = vcmp.eq.f32.partialorder %v1467, 0.0
      %v1507 = vand.u32 %v1467, 2147483648
      %v1508 = vsel %vm1506, %v1507, %v1505
      %v1509 = vrsqrt.pop %v1468
      %v1510 = vmul.f32 %v1468, %v1509
      %vm1511 = vcmp.eq.f32.partialorder %v1468, inf
      %v1512 = vsel %vm1511, %v1468, %v1510
      %vm1513 = vcmp.eq.f32.partialorder %v1468, 0.0
      %v1514 = vand.u32 %v1468, 2147483648
      %v1515 = vsel %vm1513, %v1514, %v1512
      %v1516 = vrsqrt.pop %v1469
      %v1517 = vmul.f32 %v1469, %v1516
      %vm1518 = vcmp.eq.f32.partialorder %v1469, inf
      %v1519 = vsel %vm1518, %v1469, %v1517
      %vm1520 = vcmp.eq.f32.partialorder %v1469, 0.0
      %v1521 = vand.u32 %v1469, 2147483648
      %v1522 = vsel %vm1520, %v1521, %v1519
      %v1523 = vrsqrt.pop %v1470
      %v1524 = vmul.f32 %v1470, %v1523
      %vm1525 = vcmp.eq.f32.partialorder %v1470, inf
      %v1526 = vsel %vm1525, %v1470, %v1524
      %vm1527 = vcmp.eq.f32.partialorder %v1470, 0.0
      %v1528 = vand.u32 %v1470, 2147483648
      %v1529 = vsel %vm1527, %v1528, %v1526
      %v1530 = vrsqrt.pop %v1471
      %v1531 = vmul.f32 %v1471, %v1530
      %vm1532 = vcmp.eq.f32.partialorder %v1471, inf
      %v1533 = vsel %vm1532, %v1471, %v1531
      %vm1534 = vcmp.eq.f32.partialorder %v1471, 0.0
      %v1535 = vand.u32 %v1471, 2147483648
      %v1536 = vsel %vm1534, %v1535, %v1533
      %v1537 = vrsqrt.pop %v1472
      %v1538 = vmul.f32 %v1472, %v1537
      %vm1539 = vcmp.eq.f32.partialorder %v1472, inf
      %v1540 = vsel %vm1539, %v1472, %v1538
      %vm1541 = vcmp.eq.f32.partialorder %v1472, 0.0
      %v1542 = vand.u32 %v1472, 2147483648
      %v1543 = vsel %vm1541, %v1542, %v1540
      %v1544 = vrsqrt.pop %v1473
      %v1545 = vmul.f32 %v1473, %v1544
      %vm1546 = vcmp.eq.f32.partialorder %v1473, inf
      %v1547 = vsel %vm1546, %v1473, %v1545
      %vm1548 = vcmp.eq.f32.partialorder %v1473, 0.0
      %v1549 = vand.u32 %v1473, 2147483648
      %v1550 = vsel %vm1548, %v1549, %v1547
      %v1551 = vrsqrt.pop %v1474
      %v1552 = vmul.f32 %v1474, %v1551
      %vm1553 = vcmp.eq.f32.partialorder %v1474, inf
      %v1554 = vsel %vm1553, %v1474, %v1552
      %vm1555 = vcmp.eq.f32.partialorder %v1474, 0.0
      %v1556 = vand.u32 %v1474, 2147483648
      %v1557 = vsel %vm1555, %v1556, %v1554
      %v1558 = vrsqrt.pop %v1475
      %v1559 = vmul.f32 %v1475, %v1558
      %vm1560 = vcmp.eq.f32.partialorder %v1475, inf
      %v1561 = vsel %vm1560, %v1475, %v1559
      %vm1562 = vcmp.eq.f32.partialorder %v1475, 0.0
      %v1563 = vand.u32 %v1475, 2147483648
      %v1564 = vsel %vm1562, %v1563, %v1561
      %v1565 = vrsqrt.pop %v1476
      %v1566 = vmul.f32 %v1476, %v1565
      %vm1567 = vcmp.eq.f32.partialorder %v1476, inf
      %v1568 = vsel %vm1567, %v1476, %v1566
      %vm1569 = vcmp.eq.f32.partialorder %v1476, 0.0
      %v1570 = vand.u32 %v1476, 2147483648
      %v1571 = vsel %vm1569, %v1570, %v1568
      %v1572 = vrsqrt.pop %v1477
      %v1573 = vmul.f32 %v1477, %v1572
      %vm1574 = vcmp.eq.f32.partialorder %v1477, inf
      %v1575 = vsel %vm1574, %v1477, %v1573
      %vm1576 = vcmp.eq.f32.partialorder %v1477, 0.0
      %v1577 = vand.u32 %v1477, 2147483648
      %v1578 = vsel %vm1576, %v1577, %v1575
      %v1579 = vrsqrt.pop %v1478
      %v1580 = vmul.f32 %v1478, %v1579
      %vm1581 = vcmp.eq.f32.partialorder %v1478, inf
      %v1582 = vsel %vm1581, %v1478, %v1580
      %vm1583 = vcmp.eq.f32.partialorder %v1478, 0.0
      %v1584 = vand.u32 %v1478, 2147483648
      %v1585 = vsel %vm1583, %v1584, %v1582
      %v1586 = vrsqrt.pop %v1479
      %v1587 = vmul.f32 %v1479, %v1586
      %vm1588 = vcmp.eq.f32.partialorder %v1479, inf
      %v1589 = vsel %vm1588, %v1479, %v1587
      %vm1590 = vcmp.eq.f32.partialorder %v1479, 0.0
      %v1591 = vand.u32 %v1479, 2147483648
      %v1592 = vsel %vm1590, %v1591, %v1589
      %s1593 = scalar_select %p1480, 1, 0
      %v1594 = vstv %s1593
      %vm1595 = vcmp.eq.s32.totalorder %v1594, 1
      %v1596 = vsel %vm1595, %v1487, %v1464
      %v1597 = vsel %vm1595, %v1494, %v1465
      %v1598 = vsel %vm1595, %v1501, %v1466
      %v1599 = vsel %vm1595, %v1508, %v1467
      %v1600 = vsel %vm1595, %v1515, %v1468
      %v1601 = vsel %vm1595, %v1522, %v1469
      %v1602 = vsel %vm1595, %v1529, %v1470
      %v1603 = vsel %vm1595, %v1536, %v1471
      %v1604 = vsel %vm1595, %v1543, %v1472
      %v1605 = vsel %vm1595, %v1550, %v1473
      %v1606 = vsel %vm1595, %v1557, %v1474
      %v1607 = vsel %vm1595, %v1564, %v1475
      %v1608 = vsel %vm1595, %v1571, %v1476
      %v1609 = vsel %vm1595, %v1578, %v1477
      %v1610 = vsel %vm1595, %v1585, %v1478
      %v1611 = vsel %vm1595, %v1592, %v1479
      %p1612 = scmp.eq.s32.totalorder %s191, 0
      %s1613 = scalar_select %p1612, 1, 0
      %v1614 = vstv %s1613
      %vm1615 = vcmp.eq.s32.totalorder %v1614, 1
      %v1616 = vsel %vm1615, %v876, %v1596
      %v1617 = vsel %vm1615, %v878, %v1597
      %v1618 = vsel %vm1615, %v1054, %v1598
      %v1619 = vsel %vm1615, %v1056, %v1599
      %v1620 = vsel %vm1615, %v882, %v1600
      %v1621 = vsel %vm1615, %v884, %v1601
      %v1622 = vsel %vm1615, %v1060, %v1602
      %v1623 = vsel %vm1615, %v1062, %v1603
      %v1624 = vsel %vm1615, %v888, %v1604
      %v1625 = vsel %vm1615, %v890, %v1605
      %v1626 = vsel %vm1615, %v1066, %v1606
      %v1627 = vsel %vm1615, %v1068, %v1607
      %v1628 = vsel %vm1615, %v894, %v1608
      %v1629 = vsel %vm1615, %v896, %v1609
      %v1630 = vsel %vm1615, %v1072, %v1610
      %v1631 = vsel %vm1615, %v1074, %v1611
      %1632 = vst [vmem:[%s189] sm:$0xff] %v1616
      %1633 = vst [vmem:[%s189 + $0x8] sm:$0xff] %v1617
      %1634 = vst [vmem:[%s189 + $0x10] sm:$0xff] %v1618
      %1635 = vst [vmem:[%s189 + $0x18] sm:$0xff] %v1619
      %1636 = vst [vmem:[%s189 + $0x40] sm:$0xff] %v1620
      %1637 = vst [vmem:[%s189 + $0x48] sm:$0xff] %v1621
      %1638 = vst [vmem:[%s189 + $0x50] sm:$0xff] %v1622
      %1639 = vst [vmem:[%s189 + $0x58] sm:$0xff] %v1623
      %1640 = vst [vmem:[%s189 + $0x80] sm:$0xff] %v1624
      %1641 = vst [vmem:[%s189 + $0x88] sm:$0xff] %v1625
      %1642 = vst [vmem:[%s189 + $0x90] sm:$0xff] %v1626
      %1643 = vst [vmem:[%s189 + $0x98] sm:$0xff] %v1627
      %1644 = vst [vmem:[%s189 + $0xc0] sm:$0xff] %v1628
      %1645 = vst [vmem:[%s189 + $0xc8] sm:$0xff] %v1629
      %1646 = vst [vmem:[%s189 + $0xd0] sm:$0xff] %v1630
      %1647 = vst [vmem:[%s189 + $0xd8] sm:$0xff] %v1631
      %v1648 = vsel %vm1615, %v1232, 0.0
      %v1649 = vsel %vm1615, %v1234, 0.0
      %v1650 = vsel %vm1615, %v1410, 0.0
      %v1651 = vsel %vm1615, %v1412, 0.0
      %v1652 = vsel %vm1615, %v1238, 0.0
      %v1653 = vsel %vm1615, %v1240, 0.0
      %v1654 = vsel %vm1615, %v1416, 0.0
      %v1655 = vsel %vm1615, %v1418, 0.0
      %v1656 = vsel %vm1615, %v1244, 0.0
      %v1657 = vsel %vm1615, %v1246, 0.0
      %v1658 = vsel %vm1615, %v1422, 0.0
      %v1659 = vsel %vm1615, %v1424, 0.0
      %v1660 = vsel %vm1615, %v1250, 0.0
      %v1661 = vsel %vm1615, %v1252, 0.0
      %v1662 = vsel %vm1615, %v1428, 0.0
      %v1663 = vsel %vm1615, %v1430, 0.0
      %1664 = vst [vmem:[%s189 + $0x20] sm:$0xff] %v1648
      %1665 = vst [vmem:[%s189 + $0x28] sm:$0xff] %v1649
      %1666 = vst [vmem:[%s189 + $0x30] sm:$0xff] %v1650
      %1667 = vst [vmem:[%s189 + $0x38] sm:$0xff] %v1651
      %1668 = vst [vmem:[%s189 + $0x60] sm:$0xff] %v1652
      %1669 = vst [vmem:[%s189 + $0x68] sm:$0xff] %v1653
      %1670 = vst [vmem:[%s189 + $0x70] sm:$0xff] %v1654
      %1671 = vst [vmem:[%s189 + $0x78] sm:$0xff] %v1655
      %1672 = vst [vmem:[%s189 + $0xa0] sm:$0xff] %v1656
      %1673 = vst [vmem:[%s189 + $0xa8] sm:$0xff] %v1657
      %1674 = vst [vmem:[%s189 + $0xb0] sm:$0xff] %v1658
      %1675 = vst [vmem:[%s189 + $0xb8] sm:$0xff] %v1659
      %1676 = vst [vmem:[%s189 + $0xe0] sm:$0xff] %v1660
      %1677 = vst [vmem:[%s189 + $0xe8] sm:$0xff] %v1661
      %1678 = vst [vmem:[%s189 + $0xf0] sm:$0xff] %v1662
      %1679 = vst [vmem:[%s189 + $0xf8] sm:$0xff] %v1663
      %s1680 = smul.u32 4, %s25
      %p1681 = scmp.lt.s32.totalorder %s1680, 47
      %s1682 = scalar_select %p1681, %s1680, 47
      %s1683 = smul.addr %s1682, 8
      %s1684 = smul.addr %s1683, 8
      %s1685 = scalar_lea.vmem %s4, %s1684
      // Predicated region
      $region29: #{model_forward.1} parent=27 // pred_check
        %p1686 = pneg %p97
      $region30: #{model_forward.1} parent=27 // pred_check_branch
        %1688 = sbr.rel (%p1686) target = $region32
      $region31: #{model_forward.1} parent=27 // pred_region
        %s1689 = smul.u32 4, %s25
      $region32: #{model_forward.1} parent=27 // pred_fallthru
        _
    $region28: #{model_forward.1} parent=5 // pred_fallthru
      _
    %p1690 = scmp.le.s32.totalorder 2, %s20
    // Predicated region
    $region33: #{model_forward.1} parent=5 // pred_check
      %p1691 = pneg %p1690
    $region34: #{model_forward.1} parent=5 // pred_check_branch
      %1693 = sbr.rel (%p1691) target = $region36
    $region35: #{model_forward.1} parent=5 // pred_region
      %s1694 = ssub.s32 %s20, 2
      // Predicated region
      $region37: #{model_forward.1} parent=35 // pred_check
        %p1695 = pneg %p103
      $region38: #{model_forward.1} parent=35 // pred_check_branch
        %1697 = sbr.rel (%p1695) target = $region40
      $region39: #{model_forward.1} parent=35 // pred_region
        %s1698 = smul.u32 4, %s26
        %p1699 = scmp.lt.s32.totalorder %s1698, 47
        %s1700 = scalar_select %p1699, %s1698, 47
        %s1701 = smul.addr %s1700, 8
        %s1702 = smul.addr %s1701, 8
        %s1703 = scalar_lea.vmem %s4, %s1702
      $region40: #{model_forward.1} parent=35 // pred_fallthru
        _
    $region36: #{model_forward.1} parent=5 // pred_fallthru
      _
  $region6: #{model_forward.1} parent=0 // loop_footer
    %s24 = sadd.s32 1, %s20
  $region7: #{model_forward.1} parent=0 // loop_footer_branch
    %19 = sbr.rel target = $region3
  $region8: #{model_forward.1} parent=0 // loop_exit
    _

</llo_original>
